<compile_context>
chip_gen: v5e
topology: v5e:2x2
jax: 0.10.0
libtpu: 0.0.40
codegen_flags: <defaults>
</compile_context>

<pallas_src>
import functools

import jax
import jax.numpy as jnp
import numpy as np
from jax.experimental import pallas as pl
from jax.experimental.pallas import tpu as pltpu


CONFIG = {
    "stem_params": {
        "conv": dict(in_channels=4, out_channels=8, kernel_size=(3, 3),
                     stride=(1, 1), padding=(1, 1), bias=False),
        "maxpool": dict(kernel_size=2, stride=2),
    },
    "layers_params": [
        dict(in_channels=8, out_channels=8, stride=(1, 1)),
        dict(in_channels=8, out_channels=16, stride=(2, 2)),
    ],
    "output_channels": 32,
    "apply_gap": True,
}

BN_EPS = 1e-5
SUBLANES = 8


def _round_up(x, m):
    return (x + m - 1) // m * m


def _downsample_matrix(H, W):
    """(H*W, (H//2)*(W//2)) 0/1 f32 matrix selecting the even-(h, w) pixels."""
    Ho, Wo = H // 2, W // 2
    k = np.arange(Ho * Wo)
    src = 2 * (k // Wo) * W + 2 * (k % Wo)
    S = np.zeros((H * W, Ho * Wo), np.float32)
    S[src, k] = 1.0
    return jnp.asarray(S)


# ============================================================================
# Kernel builder (static shapes / plan derived from the config)
# ============================================================================
def _make_resnet_kernel(config, H0, W0, C0):
    stem = config["stem_params"]["conv"]
    mp = config["stem_params"]["maxpool"]
    blocks = config["layers_params"]
    c_final = config["output_channels"]
    apply_gap = config["apply_gap"]

    assert stem["in_channels"] == C0
    assert tuple(stem["kernel_size"]) == (3, 3)
    assert tuple(stem["stride"]) == (1, 1) and tuple(stem["padding"]) == (1, 1)
    assert mp["kernel_size"] == 2 and mp["stride"] == 2

    C0p = _round_up(C0, SUBLANES)         # stem Cin padded to one sublane tile
    C1 = stem["out_channels"]
    assert C1 % SUBLANES == 0

    # ---------------- plan: staging buffers + selection matrices ------------
    scratch_shapes = []
    buf_index = {}            # (cin, h*w, w) -> scratch index
    sel_index = {}            # (h, w) -> index into selection-matrix inputs
    sel_keys = []

    def conv_buf(cin, h, w):
        assert w >= 2 and (w & (w - 1)) == 0, "lane masks need power-of-two W"
        key = (cin, h * w, w)
        if key not in buf_index:
            scratch_shapes.append(
                pltpu.VMEM((cin, h * w + 2 * (w + 1)), jnp.float32))
            buf_index[key] = len(scratch_shapes) - 1

    def downsample_mat(h, w):
        assert h % 2 == 0 and w % 2 == 0
        if (h, w) not in sel_index:
            sel_index[(h, w)] = len(sel_keys)
            sel_keys.append((h, w))
        return sel_index[(h, w)]

    plan = []
    conv_buf(C0p, H0, W0)                 # stem conv staging
    conv_buf(C1, H0, W0)                  # max-pool staging (may dedupe)
    downsample_mat(H0, W0)
    H, W, C = H0 // 2, W0 // 2, C1
    n_wb = 2                              # stem (w, b)

    for bp in blocks:
        cin, cout = bp["in_channels"], bp["out_channels"]
        stride = tuple(bp["stride"])
        assert cin == C and cout % SUBLANES == 0
        if stride == (1, 1):
            conv_buf(cin, H, W)
            conv_buf(cout, H, W)
            proj = cin != cout
            plan.append(dict(kind="s1", proj=proj))
            n_wb += 6 if proj else 4
        elif stride == (2, 2):
            conv_buf(cin, H, W)                       # conv1 at full resolution
            conv_buf(cout, H // 2, W // 2)            # conv2 at reduced resolution
            plan.append(dict(kind="s2", sel=downsample_mat(H, W)))
            H, W = H // 2, W // 2
            n_wb += 6
        else:
            raise NotImplementedError(f"unsupported block stride {stride}")
        C = cout
    n_wb += 2                             # out conv (w, b)
    Hf, Wf = H, W
    n_sel = len(sel_keys)

    # ---------------- the fused kernel (one grid step == one image) ---------
    def kernel(*args):
        x_ref = args[0]
        wb = args[1:1 + n_wb]
        sel = args[1 + n_wb:1 + n_wb + n_sel]
        o_ref = args[1 + n_wb + n_sel]
        scr = args[2 + n_wb + n_sel:]

        # Zero ONLY the halo lanes of each staging buffer (interiors are fully
        # rewritten before every use).  Done every step: safe under "parallel".
        for (cin, hw, w), idx in buf_index.items():
            buf = scr[idx]
            zeros = jnp.zeros((cin, w + 1), jnp.float32)
            buf[:, 0:w + 1] = zeros
            buf[:, w + 1 + hw:hw + 2 * (w + 1)] = zeros

        mask_cache = {}

        def edge_masks(hw, w):
            # (1, hw) lane masks removing row-wraparound taps (emitted once
            # per distinct spatial size).
            if (hw, w) not in mask_cache:
                col = jax.lax.broadcasted_iota(jnp.int32, (1, hw), 1) & (w - 1)
                mask_cache[(hw, w)] = (col != 0, col != (w - 1))
            return mask_cache[(hw, w)]

        cursor = [0]

        def next_wb():
            wgt, b = wb[cursor[0]], wb[cursor[0] + 1]
            cursor[0] += 2
            return wgt, b

        def stage(act, h, w):
            """Write act (Cin, h*w) into the interior of its haloed buffer."""
            hw = h * w
            buf = scr[buf_index[(act.shape[0], hw, w)]]
            base = w + 1
            buf[:, base:base + hw] = act
            return buf, base

        def conv3x3(act, w_ref, b_ref, h, w, relu, acc0=None):
            """3x3/stride-1/pad-1 conv (+folded-BN bias, opt residual, ReLU).

            Lane-major: one merged-K MXU matmul (Cout, 9*Cin) @ (9*Cin, h*w);
            the 9 taps are static-lane-offset reads of the zero-haloed buffer,
            left/right image-edge columns removed by lane masks.
            """
            hw = h * w
            buf, base = stage(act, h, w)
            m_l, m_r = edge_masks(hw, w)
            taps = []
            for di in (-1, 0, 1):
                for dj in (-1, 0, 1):
                    s = base + di * w + dj
                    t = buf[:, s:s + hw]
                    if dj == -1:
                        t = jnp.where(m_l, t, 0.0)
                    elif dj == 1:
                        t = jnp.where(m_r, t, 0.0)
                    taps.append(t)
            stacked = jnp.concatenate(taps, axis=0)            # (9*Cin, hw)
            y = jnp.dot(w_ref[...], stacked,
                        preferred_element_type=jnp.float32) + b_ref[...]
            if acc0 is not None:
                y = y + acc0
            if relu:
                y = jnp.maximum(y, 0.0)
            return y

        def maxpool2x2(act, h, w):
            """2x2/stride-2 max pool: 4 shifted reads + VPU max + one 0/1
            selection matmul picking the even-(h, w) lanes."""
            hw = h * w
            buf, base = stage(act, h, w)
            m = jnp.maximum(
                jnp.maximum(buf[:, base:base + hw],
                            buf[:, base + 1:base + 1 + hw]),
                jnp.maximum(buf[:, base + w:base + w + hw],
                            buf[:, base + w + 1:base + w + 1 + hw]))
            S = sel[sel_index[(h, w)]][...]
            return jnp.dot(m, S, preferred_element_type=jnp.float32)

        # ---------------- stem: 3x3 conv + BN + ReLU, 2x2 max pool ----------
        w_s, b_s = next_wb()
        act = conv3x3(x_ref[0], w_s, b_s, H0, W0, relu=True)   # (C1, H0*W0)
        act = maxpool2x2(act, H0, W0)                          # (C1, H1*W1)

        # ---------------- residual blocks ------------------------------------
        h, w = H0 // 2, W0 // 2
        for p in plan:
            w1, b1 = next_wb()
            w2, b2 = next_wb()
            if p["kind"] == "s1":
                y = conv3x3(act, w1, b1, h, w, relu=True)
                if p["proj"]:                       # 1x1 projection shortcut
                    wsc, bsc = next_wb()
                    shortcut = jnp.dot(wsc[...], act,
                                       preferred_element_type=jnp.float32)
                    shortcut = shortcut + bsc[...]
                else:                               # identity shortcut
                    shortcut = act
                # conv2 + BN + residual add, then ReLU (fused)
                act = conv3x3(y, w2, b2, h, w, relu=True, acc0=shortcut)
            else:                                   # stride (2, 2) block
                wsc, bsc = next_wb()
                S = sel[p["sel"]][...]
                # conv1 at full resolution, then pick the stride-2 lanes
                y = conv3x3(act, w1, b1, h, w, relu=True)
                y = jnp.dot(y, S, preferred_element_type=jnp.float32)
                # 1x1 / stride-2 projection shortcut (+BN)
                act_ds = jnp.dot(act, S, preferred_element_type=jnp.float32)
                shortcut = jnp.dot(wsc[...], act_ds,
                                   preferred_element_type=jnp.float32)
                shortcut = shortcut + bsc[...]
                h, w = h // 2, w // 2
                act = conv3x3(y, w2, b2, h, w, relu=True, acc0=shortcut)

        # ---------------- 1x1 out conv + BN + ReLU, then GAP -----------------
        w_o, b_o = next_wb()
        y = jnp.dot(w_o[...], act, preferred_element_type=jnp.float32) + b_o[...]
        y = jnp.maximum(y, 0.0)                                # (Cf, Hf*Wf)
        if apply_gap:
            o_ref[0] = jnp.mean(y, axis=1, keepdims=True)      # (Cf, 1)
        else:
            o_ref[0] = y

    return (kernel, scratch_shapes, n_wb, sel_keys, C0p,
            (Hf, Wf, c_final), apply_gap)


# ============================================================================
# Host wrapper: one pallas_call for the whole forward pass
# ============================================================================
def resnet18_forward(x_nchw, params, config=CONFIG):
    """x_nchw: (N, Cin, H, W) -> (N, output_channels) (or NCHW map w/o GAP)."""
    N, C0, H0, W0 = x_nchw.shape

    (kernel, scratch_shapes, n_wb, sel_keys, C0p, (Hf, Wf, Cf),
     apply_gap) = _make_resnet_kernel(config, H0, W0, C0)

    # Lane-major layout: activations are (C, H*W) with the spatial axis on the
    # lane dimension; NCHW flattens to that for free.
    x = x_nchw.reshape(N, C0, H0 * W0).astype(jnp.float32)
    kh, kw = config["stem_params"]["conv"]["kernel_size"]
    if C0p != C0:             # pad stem input channels to one sublane tile
        x = jnp.concatenate(
            [x, jnp.zeros((N, C0p - C0, H0 * W0), jnp.float32)], axis=1)

    wb_flat = []
    for idx, (wgt, b) in enumerate(params):
        if idx == 0 and C0p != C0:   # pad the stem weight's Cin to match
            cout = wgt.shape[0]
            wgt = jnp.pad(wgt.reshape(cout, kh * kw, C0),
                          ((0, 0), (0, 0), (0, C0p - C0)))
            wgt = wgt.reshape(cout, kh * kw * C0p)
        wb_flat += [wgt.astype(jnp.float32), b.astype(jnp.float32)]
    assert len(wb_flat) == n_wb

    sels = [_downsample_matrix(h, w) for (h, w) in sel_keys]

    def _const(rank):
        return lambda n: (0,) * rank

    in_specs = [pl.BlockSpec((1, C0p, H0 * W0), lambda n: (n, 0, 0))]
    in_specs += [pl.BlockSpec(tuple(a.shape), _const(a.ndim))
                 for a in wb_flat + sels]

    if apply_gap:
        out_shape = jax.ShapeDtypeStruct((N, Cf, 1), jnp.float32)
        out_spec = pl.BlockSpec((1, Cf, 1), lambda n: (n, 0, 0))
    else:
        out_shape = jax.ShapeDtypeStruct((N, Cf, Hf * Wf), jnp.float32)
        out_spec = pl.BlockSpec((1, Cf, Hf * Wf), lambda n: (n, 0, 0))

    y = pl.pallas_call(
        kernel,
        out_shape=out_shape,
        grid=(N,),
        in_specs=in_specs,
        out_specs=out_spec,
        scratch_shapes=scratch_shapes,
        compiler_params=pltpu.CompilerParams(
            dimension_semantics=("parallel",)),
    )(x, *wb_flat, *sels)

    if apply_gap:
        return y.reshape(N, Cf)
    return y.reshape(N, Cf, Hf, Wf)


# ============================================================================
# Deterministic synthetic parameters (BN folded into weights at build time)
# ============================================================================
def make_conv_bn_params(key, cin, cout, kh, kw):
    k1, k2, k3, k4, k5 = jax.random.split(key, 5)
    w = 0.1 * jax.random.normal(k1, (kh, kw, cin, cout), jnp.float32)
    gamma = 1.0 + 0.1 * jax.random.normal(k2, (cout,), jnp.float32)
    beta = 0.1 * jax.random.normal(k3, (cout,), jnp.float32)
    mean = 0.1 * jax.random.normal(k4, (cout,), jnp.float32)
    var = 1.0 + 0.1 * jnp.abs(jax.random.normal(k5, (cout,), jnp.float32))
    scale = gamma / jnp.sqrt(var + BN_EPS)
    # lane-major, folded-BN weight: (Cout, kh*kw*Cin), K ordered [tap][cin]
    w_lm = (w * scale[None, None, None, :]).transpose(3, 0, 1, 2)
    w_lm = w_lm.reshape(cout, kh * kw * cin)
    bias = (beta - mean * scale).reshape(cout, 1)
    return w_lm, bias


def build_params(key, config):
    """Ordered list of (w, b): stem, [conv1, conv2, (shortcut)] per block, out."""
    plist = []
    sc = config["stem_params"]["conv"]
    key, k = jax.random.split(key)
    kh, kw = sc["kernel_size"]
    plist.append(make_conv_bn_params(k, sc["in_channels"],
                                     sc["out_channels"], kh, kw))
    for blk in config["layers_params"]:
        cin, cout = blk["in_channels"], blk["out_channels"]
        stride = tuple(blk["stride"])
        key, k1, k2, k3 = jax.random.split(key, 4)
        plist.append(make_conv_bn_params(k1, cin, cout, 3, 3))
        plist.append(make_conv_bn_params(k2, cout, cout, 3, 3))
        if stride != (1, 1) or cin != cout:
            plist.append(make_conv_bn_params(k3, cin, cout, 1, 1))
    key, k = jax.random.split(key)
    plist.append(make_conv_bn_params(
        k, config["layers_params"][-1]["out_channels"],
        config["output_channels"], 1, 1))
    return plist


# ============================================================================
# Pure-JAX reference (for correctness validation of the fused kernel)
# ============================================================================
def _conv_bn_ref(x, wb, stride, padding, relu):
    w_lm, b = wb
    cout = w_lm.shape[0]
    cin = x.shape[-1]
    k = int(round((w_lm.shape[1] // cin) ** 0.5))
    w = w_lm.reshape(cout, k, k, cin).transpose(1, 2, 3, 0)    # -> HWIO
    y = jax.lax.conv_general_dilated(
        x, w, stride, [(padding, padding), (padding, padding)],
        dimension_numbers=("NHWC", "HWIO", "NHWC"),
        precision=jax.lax.Precision.HIGHEST)
    y = y + b.reshape(1, 1, 1, cout)
    return jnp.maximum(y, 0.0) if relu else y


def resnet18_reference(x_nchw, params, config=CONFIG):
    x = jnp.transpose(x_nchw, (0, 2, 3, 1)).astype(jnp.float32)
    it = iter(params)
    x = _conv_bn_ref(x, next(it), (1, 1), 1, True)
    x = jax.lax.reduce_window(x, -jnp.inf, jax.lax.max,
                              (1, 2, 2, 1), (1, 2, 2, 1), "VALID")
    for blk in config["layers_params"]:
        cin, cout = blk["in_channels"], blk["out_channels"]
        stride = tuple(blk["stride"])
        y = _conv_bn_ref(x, next(it), stride, 1, True)
        y = _conv_bn_ref(y, next(it), (1, 1), 1, False)
        sc = (_conv_bn_ref(x, next(it), stride, 0, False)
              if (stride != (1, 1) or cin != cout) else x)
        x = jnp.maximum(y + sc, 0.0)
    x = _conv_bn_ref(x, next(it), (1, 1), 0, True)
    if config["apply_gap"]:
        return jnp.mean(x, axis=(1, 2))
    return jnp.transpose(x, (0, 3, 1, 2))


if __name__ == "__main__":
    key = jax.random.PRNGKey(0)
    kx, kp = jax.random.split(key)
    x = jax.random.normal(kx, (2, 4, 16, 16), jnp.float32)   # NCHW
    params = build_params(kp, CONFIG)

    fwd = jax.jit(functools.partial(resnet18_forward, config=CONFIG))
    y = fwd(x, params)
    jax.block_until_ready(y)
    assert y.shape == (2, CONFIG["output_channels"])

    y_ref = resnet18_reference(x, params, CONFIG)
    err = float(jnp.max(jnp.abs(y - y_ref)))
    assert err < 2e-2, f"kernel/reference mismatch: {err}"

    print("KERNEL_OK")
</pallas_src>

<mosaic_0001>
module attributes {stable_mosaic.version = 11 : i64} {
  func.func @kernel(%arg0: i32, %arg1: memref<1x8x256xf32, #tpu.memory_space<vmem>>, %arg2: memref<8x72xf32, #tpu.memory_space<vmem>>, %arg3: memref<8x1xf32, #tpu.memory_space<vmem>>, %arg4: memref<8x72xf32, #tpu.memory_space<vmem>>, %arg5: memref<8x1xf32, #tpu.memory_space<vmem>>, %arg6: memref<8x72xf32, #tpu.memory_space<vmem>>, %arg7: memref<8x1xf32, #tpu.memory_space<vmem>>, %arg8: memref<16x72xf32, #tpu.memory_space<vmem>>, %arg9: memref<16x1xf32, #tpu.memory_space<vmem>>, %arg10: memref<16x144xf32, #tpu.memory_space<vmem>>, %arg11: memref<16x1xf32, #tpu.memory_space<vmem>>, %arg12: memref<16x8xf32, #tpu.memory_space<vmem>>, %arg13: memref<16x1xf32, #tpu.memory_space<vmem>>, %arg14: memref<32x16xf32, #tpu.memory_space<vmem>>, %arg15: memref<32x1xf32, #tpu.memory_space<vmem>>, %arg16: memref<256x64xf32, #tpu.memory_space<vmem>>, %arg17: memref<64x16xf32, #tpu.memory_space<vmem>>, %arg18: memref<1x32x1xf32, #tpu.memory_space<vmem>>, %arg19: memref<8x290xf32, #tpu.memory_space<vmem>>, %arg20: memref<8x82xf32, #tpu.memory_space<vmem>>, %arg21: memref<16x26xf32, #tpu.memory_space<vmem>>) attributes {dimension_semantics = [#tpu.dimension_semantics<parallel>], iteration_bounds = array<i64: 2>, scalar_prefetch = 0 : i64, scratch_operands = 3 : i64, tpu.core_type = #tpu.core_type<tc>, window_params = [{transform_indices = @transform_0, window_bounds = array<i64: 1, 8, 256>}, {pipeline_mode = #tpu.pipeline_mode<synchronous>, transform_indices = @transform_1, window_bounds = array<i64: 8, 72>}, {pipeline_mode = #tpu.pipeline_mode<synchronous>, transform_indices = @transform_2, window_bounds = array<i64: 8, 1>}, {pipeline_mode = #tpu.pipeline_mode<synchronous>, transform_indices = @transform_3, window_bounds = array<i64: 8, 72>}, {pipeline_mode = #tpu.pipeline_mode<synchronous>, transform_indices = @transform_4, window_bounds = array<i64: 8, 1>}, {pipeline_mode = #tpu.pipeline_mode<synchronous>, transform_indices = @transform_5, window_bounds = array<i64: 8, 72>}, {pipeline_mode = #tpu.pipeline_mode<synchronous>, transform_indices = @transform_6, window_bounds = array<i64: 8, 1>}, {pipeline_mode = #tpu.pipeline_mode<synchronous>, transform_indices = @transform_7, window_bounds = array<i64: 16, 72>}, {pipeline_mode = #tpu.pipeline_mode<synchronous>, transform_indices = @transform_8, window_bounds = array<i64: 16, 1>}, {pipeline_mode = #tpu.pipeline_mode<synchronous>, transform_indices = @transform_9, window_bounds = array<i64: 16, 144>}, {pipeline_mode = #tpu.pipeline_mode<synchronous>, transform_indices = @transform_10, window_bounds = array<i64: 16, 1>}, {pipeline_mode = #tpu.pipeline_mode<synchronous>, transform_indices = @transform_11, window_bounds = array<i64: 16, 8>}, {pipeline_mode = #tpu.pipeline_mode<synchronous>, transform_indices = @transform_12, window_bounds = array<i64: 16, 1>}, {pipeline_mode = #tpu.pipeline_mode<synchronous>, transform_indices = @transform_13, window_bounds = array<i64: 32, 16>}, {pipeline_mode = #tpu.pipeline_mode<synchronous>, transform_indices = @transform_14, window_bounds = array<i64: 32, 1>}, {pipeline_mode = #tpu.pipeline_mode<synchronous>, transform_indices = @transform_15, window_bounds = array<i64: 256, 64>}, {pipeline_mode = #tpu.pipeline_mode<synchronous>, transform_indices = @transform_16, window_bounds = array<i64: 64, 16>}, {transform_indices = @transform_17, window_bounds = array<i64: 1, 32, 1>}]} {
    %cst = arith.constant 0.000000e+00 : f32
    %0 = vector.broadcast %cst : f32 to vector<8x17xf32>
    %c0 = arith.constant 0 : index
    %c0_0 = arith.constant 0 : index
    %1 = vector.load %arg19[%c0, %c0_0] : memref<8x290xf32, #tpu.memory_space<vmem>>, vector<8x17xf32>
    tpu.vector_store %arg19[%c0, %c0_0], %0 {strides = array<i32>} : memref<8x290xf32, #tpu.memory_space<vmem>>, vector<8x17xf32>,
    %c0_1 = arith.constant 0 : index
    %c273 = arith.constant 273 : index
    %2 = vector.load %arg19[%c0_1, %c273] : memref<8x290xf32, #tpu.memory_space<vmem>>, vector<8x17xf32>
    tpu.vector_store %arg19[%c0_1, %c273], %0 {strides = array<i32>} : memref<8x290xf32, #tpu.memory_space<vmem>>, vector<8x17xf32>,
    %cst_2 = arith.constant 0.000000e+00 : f32
    %3 = vector.broadcast %cst_2 : f32 to vector<8x9xf32>
    %c0_3 = arith.constant 0 : index
    %c0_4 = arith.constant 0 : index
    %4 = vector.load %arg20[%c0_3, %c0_4] : memref<8x82xf32, #tpu.memory_space<vmem>>, vector<8x9xf32>
    tpu.vector_store %arg20[%c0_3, %c0_4], %3 {strides = array<i32>} : memref<8x82xf32, #tpu.memory_space<vmem>>, vector<8x9xf32>,
    %c0_5 = arith.constant 0 : index
    %c73 = arith.constant 73 : index
    %5 = vector.load %arg20[%c0_5, %c73] : memref<8x82xf32, #tpu.memory_space<vmem>>, vector<8x9xf32>
    tpu.vector_store %arg20[%c0_5, %c73], %3 {strides = array<i32>} : memref<8x82xf32, #tpu.memory_space<vmem>>, vector<8x9xf32>,
    %cst_6 = arith.constant 0.000000e+00 : f32
    %6 = vector.broadcast %cst_6 : f32 to vector<16x5xf32>
    %c0_7 = arith.constant 0 : index
    %c0_8 = arith.constant 0 : index
    %7 = vector.load %arg21[%c0_7, %c0_8] : memref<16x26xf32, #tpu.memory_space<vmem>>, vector<16x5xf32>
    tpu.vector_store %arg21[%c0_7, %c0_8], %6 {strides = array<i32>} : memref<16x26xf32, #tpu.memory_space<vmem>>, vector<16x5xf32>,
    %c0_9 = arith.constant 0 : index
    %c21 = arith.constant 21 : index
    %8 = vector.load %arg21[%c0_9, %c21] : memref<16x26xf32, #tpu.memory_space<vmem>>, vector<16x5xf32>
    tpu.vector_store %arg21[%c0_9, %c21], %6 {strides = array<i32>} : memref<16x26xf32, #tpu.memory_space<vmem>>, vector<16x5xf32>,
    %c0_10 = arith.constant 0 : index
    %c0_11 = arith.constant 0 : index
    %c0_12 = arith.constant 0 : index
    %9 = vector.load %arg1[%c0_10, %c0_11, %c0_12] : memref<1x8x256xf32, #tpu.memory_space<vmem>>, vector<1x8x256xf32>
    %10 = vector.shape_cast %9 : vector<1x8x256xf32> to vector<8x256xf32>
    %c0_13 = arith.constant 0 : index
    %c17 = arith.constant 17 : index
    %11 = vector.load %arg19[%c0_13, %c17] : memref<8x290xf32, #tpu.memory_space<vmem>>, vector<8x256xf32>
    tpu.vector_store %arg19[%c0_13, %c17], %10 {strides = array<i32>} : memref<8x290xf32, #tpu.memory_space<vmem>>, vector<8x256xf32>,
    %12 = tpu.iota {dimensions = array<i32: 1>} : vector<1x256xi32>
    %c15_i32 = arith.constant 15 : i32
    %13 = vector.broadcast %c15_i32 : i32 to vector<1x256xi32>
    %14 = arith.andi %12, %13 : vector<1x256xi32>
    %c0_i32 = arith.constant 0 : i32
    %15 = vector.broadcast %c0_i32 : i32 to vector<1x256xi32>
    %16 = arith.cmpi ne, %14, %15 : vector<1x256xi32>
    %c15_i32_14 = arith.constant 15 : i32
    %17 = vector.broadcast %c15_i32_14 : i32 to vector<1x256xi32>
    %18 = arith.cmpi ne, %14, %17 : vector<1x256xi32>
    %c0_15 = arith.constant 0 : index
    %c0_16 = arith.constant 0 : index
    %19 = vector.load %arg19[%c0_15, %c0_16] : memref<8x290xf32, #tpu.memory_space<vmem>>, vector<8x256xf32>
    %cst_17 = arith.constant 0.000000e+00 : f32
    %20 = vector.shape_cast %16 : vector<1x256xi1> to vector<1x256xi1>
    %21 = vector.broadcast %20 : vector<1x256xi1> to vector<8x256xi1>
    %22 = vector.broadcast %cst_17 : f32 to vector<8x256xf32>
    %23 = arith.select %21, %19, %22 : vector<8x256xi1>, vector<8x256xf32>
    %c0_18 = arith.constant 0 : index
    %c1 = arith.constant 1 : index
    %24 = vector.load %arg19[%c0_18, %c1] : memref<8x290xf32, #tpu.memory_space<vmem>>, vector<8x256xf32>
    %c0_19 = arith.constant 0 : index
    %c2 = arith.constant 2 : index
    %25 = vector.load %arg19[%c0_19, %c2] : memref<8x290xf32, #tpu.memory_space<vmem>>, vector<8x256xf32>
    %cst_20 = arith.constant 0.000000e+00 : f32
    %26 = vector.shape_cast %18 : vector<1x256xi1> to vector<1x256xi1>
    %27 = vector.broadcast %26 : vector<1x256xi1> to vector<8x256xi1>
    %28 = vector.broadcast %cst_20 : f32 to vector<8x256xf32>
    %29 = arith.select %27, %25, %28 : vector<8x256xi1>, vector<8x256xf32>
    %c0_21 = arith.constant 0 : index
    %c16 = arith.constant 16 : index
    %30 = vector.load %arg19[%c0_21, %c16] : memref<8x290xf32, #tpu.memory_space<vmem>>, vector<8x256xf32>
    %cst_22 = arith.constant 0.000000e+00 : f32
    %31 = vector.shape_cast %16 : vector<1x256xi1> to vector<1x256xi1>
    %32 = vector.broadcast %31 : vector<1x256xi1> to vector<8x256xi1>
    %33 = vector.broadcast %cst_22 : f32 to vector<8x256xf32>
    %34 = arith.select %32, %30, %33 : vector<8x256xi1>, vector<8x256xf32>
    %c0_23 = arith.constant 0 : index
    %c17_24 = arith.constant 17 : index
    %35 = vector.load %arg19[%c0_23, %c17_24] : memref<8x290xf32, #tpu.memory_space<vmem>>, vector<8x256xf32>
    %c0_25 = arith.constant 0 : index
    %c18 = arith.constant 18 : index
    %36 = vector.load %arg19[%c0_25, %c18] : memref<8x290xf32, #tpu.memory_space<vmem>>, vector<8x256xf32>
    %cst_26 = arith.constant 0.000000e+00 : f32
    %37 = vector.shape_cast %18 : vector<1x256xi1> to vector<1x256xi1>
    %38 = vector.broadcast %37 : vector<1x256xi1> to vector<8x256xi1>
    %39 = vector.broadcast %cst_26 : f32 to vector<8x256xf32>
    %40 = arith.select %38, %36, %39 : vector<8x256xi1>, vector<8x256xf32>
    %c0_27 = arith.constant 0 : index
    %c32 = arith.constant 32 : index
    %41 = vector.load %arg19[%c0_27, %c32] : memref<8x290xf32, #tpu.memory_space<vmem>>, vector<8x256xf32>
    %cst_28 = arith.constant 0.000000e+00 : f32
    %42 = vector.shape_cast %16 : vector<1x256xi1> to vector<1x256xi1>
    %43 = vector.broadcast %42 : vector<1x256xi1> to vector<8x256xi1>
    %44 = vector.broadcast %cst_28 : f32 to vector<8x256xf32>
    %45 = arith.select %43, %41, %44 : vector<8x256xi1>, vector<8x256xf32>
    %c0_29 = arith.constant 0 : index
    %c33 = arith.constant 33 : index
    %46 = vector.load %arg19[%c0_29, %c33] : memref<8x290xf32, #tpu.memory_space<vmem>>, vector<8x256xf32>
    %c0_30 = arith.constant 0 : index
    %c34 = arith.constant 34 : index
    %47 = vector.load %arg19[%c0_30, %c34] : memref<8x290xf32, #tpu.memory_space<vmem>>, vector<8x256xf32>
    %cst_31 = arith.constant 0.000000e+00 : f32
    %48 = vector.shape_cast %18 : vector<1x256xi1> to vector<1x256xi1>
    %49 = vector.broadcast %48 : vector<1x256xi1> to vector<8x256xi1>
    %50 = vector.broadcast %cst_31 : f32 to vector<8x256xf32>
    %51 = arith.select %49, %47, %50 : vector<8x256xi1>, vector<8x256xf32>
    %52 = tpu.concatenate %23, %24, %29, %34, %35, %40, %45, %46, %51 in 0 : vector<8x256xf32>, vector<8x256xf32>, vector<8x256xf32>, vector<8x256xf32>, vector<8x256xf32>, vector<8x256xf32>, vector<8x256xf32>, vector<8x256xf32>, vector<8x256xf32> -> vector<72x256xf32>
    %c0_32 = arith.constant 0 : index
    %c0_33 = arith.constant 0 : index
    %53 = vector.load %arg2[%c0_32, %c0_33] : memref<8x72xf32, #tpu.memory_space<vmem>>, vector<8x72xf32>
    %cst_34 = arith.constant dense<0.000000e+00> : vector<8x256xf32>
    %54 = tpu.matmul %53, %52, %cst_34 {dimension_numbers = #tpu.dot_dimension_numbers<[1], [0], [0], [1], [0, 0, 1, 1], [], []>} : vector<8x72xf32>, vector<72x256xf32>, vector<8x256xf32> -> vector<8x256xf32>
    %c0_35 = arith.constant 0 : index
    %c0_36 = arith.constant 0 : index
    %55 = vector.load %arg3[%c0_35, %c0_36] : memref<8x1xf32, #tpu.memory_space<vmem>>, vector<8x1xf32>
    %56 = vector.broadcast %55 : vector<8x1xf32> to vector<8x256xf32>
    %57 = arith.addf %54, %56 : vector<8x256xf32>
    %cst_37 = arith.constant 0.000000e+00 : f32
    %58 = vector.broadcast %cst_37 : f32 to vector<8x256xf32>
    %59 = arith.maximumf %57, %58 : vector<8x256xf32>
    %c0_38 = arith.constant 0 : index
    %c17_39 = arith.constant 17 : index
    %60 = vector.load %arg19[%c0_38, %c17_39] : memref<8x290xf32, #tpu.memory_space<vmem>>, vector<8x256xf32>
    tpu.vector_store %arg19[%c0_38, %c17_39], %59 {strides = array<i32>} : memref<8x290xf32, #tpu.memory_space<vmem>>, vector<8x256xf32>,
    %c0_40 = arith.constant 0 : index
    %c17_41 = arith.constant 17 : index
    %61 = vector.load %arg19[%c0_40, %c17_41] : memref<8x290xf32, #tpu.memory_space<vmem>>, vector<8x256xf32>
    %c0_42 = arith.constant 0 : index
    %c18_43 = arith.constant 18 : index
    %62 = vector.load %arg19[%c0_42, %c18_43] : memref<8x290xf32, #tpu.memory_space<vmem>>, vector<8x256xf32>
    %63 = arith.maximumf %61, %62 : vector<8x256xf32>
    %c0_44 = arith.constant 0 : index
    %c33_45 = arith.constant 33 : index
    %64 = vector.load %arg19[%c0_44, %c33_45] : memref<8x290xf32, #tpu.memory_space<vmem>>, vector<8x256xf32>
    %c0_46 = arith.constant 0 : index
    %c34_47 = arith.constant 34 : index
    %65 = vector.load %arg19[%c0_46, %c34_47] : memref<8x290xf32, #tpu.memory_space<vmem>>, vector<8x256xf32>
    %66 = arith.maximumf %64, %65 : vector<8x256xf32>
    %67 = arith.maximumf %63, %66 : vector<8x256xf32>
    %c0_48 = arith.constant 0 : index
    %c0_49 = arith.constant 0 : index
    %68 = vector.load %arg16[%c0_48, %c0_49] : memref<256x64xf32, #tpu.memory_space<vmem>>, vector<256x64xf32>
    %cst_50 = arith.constant dense<0.000000e+00> : vector<8x64xf32>
    %69 = tpu.matmul %67, %68, %cst_50 {dimension_numbers = #tpu.dot_dimension_numbers<[1], [0], [0], [1], [0, 0, 1, 1], [], []>} : vector<8x256xf32>, vector<256x64xf32>, vector<8x64xf32> -> vector<8x64xf32>
    %c0_51 = arith.constant 0 : index
    %c9 = arith.constant 9 : index
    %70 = vector.load %arg20[%c0_51, %c9] : memref<8x82xf32, #tpu.memory_space<vmem>>, vector<8x64xf32>
    tpu.vector_store %arg20[%c0_51, %c9], %69 {strides = array<i32>} : memref<8x82xf32, #tpu.memory_space<vmem>>, vector<8x64xf32>,
    %71 = tpu.iota {dimensions = array<i32: 1>} : vector<1x64xi32>
    %c7_i32 = arith.constant 7 : i32
    %72 = vector.broadcast %c7_i32 : i32 to vector<1x64xi32>
    %73 = arith.andi %71, %72 : vector<1x64xi32>
    %c0_i32_52 = arith.constant 0 : i32
    %74 = vector.broadcast %c0_i32_52 : i32 to vector<1x64xi32>
    %75 = arith.cmpi ne, %73, %74 : vector<1x64xi32>
    %c7_i32_53 = arith.constant 7 : i32
    %76 = vector.broadcast %c7_i32_53 : i32 to vector<1x64xi32>
    %77 = arith.cmpi ne, %73, %76 : vector<1x64xi32>
    %c0_54 = arith.constant 0 : index
    %c0_55 = arith.constant 0 : index
    %78 = vector.load %arg20[%c0_54, %c0_55] : memref<8x82xf32, #tpu.memory_space<vmem>>, vector<8x64xf32>
    %cst_56 = arith.constant 0.000000e+00 : f32
    %79 = vector.shape_cast %75 : vector<1x64xi1> to vector<1x64xi1>
    %80 = vector.broadcast %79 : vector<1x64xi1> to vector<8x64xi1>
    %81 = vector.broadcast %cst_56 : f32 to vector<8x64xf32>
    %82 = arith.select %80, %78, %81 : vector<8x64xi1>, vector<8x64xf32>
    %c0_57 = arith.constant 0 : index
    %c1_58 = arith.constant 1 : index
    %83 = vector.load %arg20[%c0_57, %c1_58] : memref<8x82xf32, #tpu.memory_space<vmem>>, vector<8x64xf32>
    %c0_59 = arith.constant 0 : index
    %c2_60 = arith.constant 2 : index
    %84 = vector.load %arg20[%c0_59, %c2_60] : memref<8x82xf32, #tpu.memory_space<vmem>>, vector<8x64xf32>
    %cst_61 = arith.constant 0.000000e+00 : f32
    %85 = vector.shape_cast %77 : vector<1x64xi1> to vector<1x64xi1>
    %86 = vector.broadcast %85 : vector<1x64xi1> to vector<8x64xi1>
    %87 = vector.broadcast %cst_61 : f32 to vector<8x64xf32>
    %88 = arith.select %86, %84, %87 : vector<8x64xi1>, vector<8x64xf32>
    %c0_62 = arith.constant 0 : index
    %c8 = arith.constant 8 : index
    %89 = vector.load %arg20[%c0_62, %c8] : memref<8x82xf32, #tpu.memory_space<vmem>>, vector<8x64xf32>
    %cst_63 = arith.constant 0.000000e+00 : f32
    %90 = vector.shape_cast %75 : vector<1x64xi1> to vector<1x64xi1>
    %91 = vector.broadcast %90 : vector<1x64xi1> to vector<8x64xi1>
    %92 = vector.broadcast %cst_63 : f32 to vector<8x64xf32>
    %93 = arith.select %91, %89, %92 : vector<8x64xi1>, vector<8x64xf32>
    %c0_64 = arith.constant 0 : index
    %c9_65 = arith.constant 9 : index
    %94 = vector.load %arg20[%c0_64, %c9_65] : memref<8x82xf32, #tpu.memory_space<vmem>>, vector<8x64xf32>
    %c0_66 = arith.constant 0 : index
    %c10 = arith.constant 10 : index
    %95 = vector.load %arg20[%c0_66, %c10] : memref<8x82xf32, #tpu.memory_space<vmem>>, vector<8x64xf32>
    %cst_67 = arith.constant 0.000000e+00 : f32
    %96 = vector.shape_cast %77 : vector<1x64xi1> to vector<1x64xi1>
    %97 = vector.broadcast %96 : vector<1x64xi1> to vector<8x64xi1>
    %98 = vector.broadcast %cst_67 : f32 to vector<8x64xf32>
    %99 = arith.select %97, %95, %98 : vector<8x64xi1>, vector<8x64xf32>
    %c0_68 = arith.constant 0 : index
    %c16_69 = arith.constant 16 : index
    %100 = vector.load %arg20[%c0_68, %c16_69] : memref<8x82xf32, #tpu.memory_space<vmem>>, vector<8x64xf32>
    %cst_70 = arith.constant 0.000000e+00 : f32
    %101 = vector.shape_cast %75 : vector<1x64xi1> to vector<1x64xi1>
    %102 = vector.broadcast %101 : vector<1x64xi1> to vector<8x64xi1>
    %103 = vector.broadcast %cst_70 : f32 to vector<8x64xf32>
    %104 = arith.select %102, %100, %103 : vector<8x64xi1>, vector<8x64xf32>
    %c0_71 = arith.constant 0 : index
    %c17_72 = arith.constant 17 : index
    %105 = vector.load %arg20[%c0_71, %c17_72] : memref<8x82xf32, #tpu.memory_space<vmem>>, vector<8x64xf32>
    %c0_73 = arith.constant 0 : index
    %c18_74 = arith.constant 18 : index
    %106 = vector.load %arg20[%c0_73, %c18_74] : memref<8x82xf32, #tpu.memory_space<vmem>>, vector<8x64xf32>
    %cst_75 = arith.constant 0.000000e+00 : f32
    %107 = vector.shape_cast %77 : vector<1x64xi1> to vector<1x64xi1>
    %108 = vector.broadcast %107 : vector<1x64xi1> to vector<8x64xi1>
    %109 = vector.broadcast %cst_75 : f32 to vector<8x64xf32>
    %110 = arith.select %108, %106, %109 : vector<8x64xi1>, vector<8x64xf32>
    %111 = tpu.concatenate %82, %83, %88, %93, %94, %99, %104, %105, %110 in 0 : vector<8x64xf32>, vector<8x64xf32>, vector<8x64xf32>, vector<8x64xf32>, vector<8x64xf32>, vector<8x64xf32>, vector<8x64xf32>, vector<8x64xf32>, vector<8x64xf32> -> vector<72x64xf32>
    %c0_76 = arith.constant 0 : index
    %c0_77 = arith.constant 0 : index
    %112 = vector.load %arg4[%c0_76, %c0_77] : memref<8x72xf32, #tpu.memory_space<vmem>>, vector<8x72xf32>
    %cst_78 = arith.constant dense<0.000000e+00> : vector<8x64xf32>
    %113 = tpu.matmul %112, %111, %cst_78 {dimension_numbers = #tpu.dot_dimension_numbers<[1], [0], [0], [1], [0, 0, 1, 1], [], []>} : vector<8x72xf32>, vector<72x64xf32>, vector<8x64xf32> -> vector<8x64xf32>
    %c0_79 = arith.constant 0 : index
    %c0_80 = arith.constant 0 : index
    %114 = vector.load %arg5[%c0_79, %c0_80] : memref<8x1xf32, #tpu.memory_space<vmem>>, vector<8x1xf32>
    %115 = vector.broadcast %114 : vector<8x1xf32> to vector<8x64xf32>
    %116 = arith.addf %113, %115 : vector<8x64xf32>
    %cst_81 = arith.constant 0.000000e+00 : f32
    %117 = vector.broadcast %cst_81 : f32 to vector<8x64xf32>
    %118 = arith.maximumf %116, %117 : vector<8x64xf32>
    %c0_82 = arith.constant 0 : index
    %c9_83 = arith.constant 9 : index
    %119 = vector.load %arg20[%c0_82, %c9_83] : memref<8x82xf32, #tpu.memory_space<vmem>>, vector<8x64xf32>
    tpu.vector_store %arg20[%c0_82, %c9_83], %118 {strides = array<i32>} : memref<8x82xf32, #tpu.memory_space<vmem>>, vector<8x64xf32>,
    %c0_84 = arith.constant 0 : index
    %c0_85 = arith.constant 0 : index
    %120 = vector.load %arg20[%c0_84, %c0_85] : memref<8x82xf32, #tpu.memory_space<vmem>>, vector<8x64xf32>
    %cst_86 = arith.constant 0.000000e+00 : f32
    %121 = vector.shape_cast %75 : vector<1x64xi1> to vector<1x64xi1>
    %122 = vector.broadcast %121 : vector<1x64xi1> to vector<8x64xi1>
    %123 = vector.broadcast %cst_86 : f32 to vector<8x64xf32>
    %124 = arith.select %122, %120, %123 : vector<8x64xi1>, vector<8x64xf32>
    %c0_87 = arith.constant 0 : index
    %c1_88 = arith.constant 1 : index
    %125 = vector.load %arg20[%c0_87, %c1_88] : memref<8x82xf32, #tpu.memory_space<vmem>>, vector<8x64xf32>
    %c0_89 = arith.constant 0 : index
    %c2_90 = arith.constant 2 : index
    %126 = vector.load %arg20[%c0_89, %c2_90] : memref<8x82xf32, #tpu.memory_space<vmem>>, vector<8x64xf32>
    %cst_91 = arith.constant 0.000000e+00 : f32
    %127 = vector.shape_cast %77 : vector<1x64xi1> to vector<1x64xi1>
    %128 = vector.broadcast %127 : vector<1x64xi1> to vector<8x64xi1>
    %129 = vector.broadcast %cst_91 : f32 to vector<8x64xf32>
    %130 = arith.select %128, %126, %129 : vector<8x64xi1>, vector<8x64xf32>
    %c0_92 = arith.constant 0 : index
    %c8_93 = arith.constant 8 : index
    %131 = vector.load %arg20[%c0_92, %c8_93] : memref<8x82xf32, #tpu.memory_space<vmem>>, vector<8x64xf32>
    %cst_94 = arith.constant 0.000000e+00 : f32
    %132 = vector.shape_cast %75 : vector<1x64xi1> to vector<1x64xi1>
    %133 = vector.broadcast %132 : vector<1x64xi1> to vector<8x64xi1>
    %134 = vector.broadcast %cst_94 : f32 to vector<8x64xf32>
    %135 = arith.select %133, %131, %134 : vector<8x64xi1>, vector<8x64xf32>
    %c0_95 = arith.constant 0 : index
    %c9_96 = arith.constant 9 : index
    %136 = vector.load %arg20[%c0_95, %c9_96] : memref<8x82xf32, #tpu.memory_space<vmem>>, vector<8x64xf32>
    %c0_97 = arith.constant 0 : index
    %c10_98 = arith.constant 10 : index
    %137 = vector.load %arg20[%c0_97, %c10_98] : memref<8x82xf32, #tpu.memory_space<vmem>>, vector<8x64xf32>
    %cst_99 = arith.constant 0.000000e+00 : f32
    %138 = vector.shape_cast %77 : vector<1x64xi1> to vector<1x64xi1>
    %139 = vector.broadcast %138 : vector<1x64xi1> to vector<8x64xi1>
    %140 = vector.broadcast %cst_99 : f32 to vector<8x64xf32>
    %141 = arith.select %139, %137, %140 : vector<8x64xi1>, vector<8x64xf32>
    %c0_100 = arith.constant 0 : index
    %c16_101 = arith.constant 16 : index
    %142 = vector.load %arg20[%c0_100, %c16_101] : memref<8x82xf32, #tpu.memory_space<vmem>>, vector<8x64xf32>
    %cst_102 = arith.constant 0.000000e+00 : f32
    %143 = vector.shape_cast %75 : vector<1x64xi1> to vector<1x64xi1>
    %144 = vector.broadcast %143 : vector<1x64xi1> to vector<8x64xi1>
    %145 = vector.broadcast %cst_102 : f32 to vector<8x64xf32>
    %146 = arith.select %144, %142, %145 : vector<8x64xi1>, vector<8x64xf32>
    %c0_103 = arith.constant 0 : index
    %c17_104 = arith.constant 17 : index
    %147 = vector.load %arg20[%c0_103, %c17_104] : memref<8x82xf32, #tpu.memory_space<vmem>>, vector<8x64xf32>
    %c0_105 = arith.constant 0 : index
    %c18_106 = arith.constant 18 : index
    %148 = vector.load %arg20[%c0_105, %c18_106] : memref<8x82xf32, #tpu.memory_space<vmem>>, vector<8x64xf32>
    %cst_107 = arith.constant 0.000000e+00 : f32
    %149 = vector.shape_cast %77 : vector<1x64xi1> to vector<1x64xi1>
    %150 = vector.broadcast %149 : vector<1x64xi1> to vector<8x64xi1>
    %151 = vector.broadcast %cst_107 : f32 to vector<8x64xf32>
    %152 = arith.select %150, %148, %151 : vector<8x64xi1>, vector<8x64xf32>
    %153 = tpu.concatenate %124, %125, %130, %135, %136, %141, %146, %147, %152 in 0 : vector<8x64xf32>, vector<8x64xf32>, vector<8x64xf32>, vector<8x64xf32>, vector<8x64xf32>, vector<8x64xf32>, vector<8x64xf32>, vector<8x64xf32>, vector<8x64xf32> -> vector<72x64xf32>
    %c0_108 = arith.constant 0 : index
    %c0_109 = arith.constant 0 : index
    %154 = vector.load %arg6[%c0_108, %c0_109] : memref<8x72xf32, #tpu.memory_space<vmem>>, vector<8x72xf32>
    %cst_110 = arith.constant dense<0.000000e+00> : vector<8x64xf32>
    %155 = tpu.matmul %154, %153, %cst_110 {dimension_numbers = #tpu.dot_dimension_numbers<[1], [0], [0], [1], [0, 0, 1, 1], [], []>} : vector<8x72xf32>, vector<72x64xf32>, vector<8x64xf32> -> vector<8x64xf32>
    %c0_111 = arith.constant 0 : index
    %c0_112 = arith.constant 0 : index
    %156 = vector.load %arg7[%c0_111, %c0_112] : memref<8x1xf32, #tpu.memory_space<vmem>>, vector<8x1xf32>
    %157 = vector.broadcast %156 : vector<8x1xf32> to vector<8x64xf32>
    %158 = arith.addf %155, %157 : vector<8x64xf32>
    %159 = arith.addf %158, %69 : vector<8x64xf32>
    %cst_113 = arith.constant 0.000000e+00 : f32
    %160 = vector.broadcast %cst_113 : f32 to vector<8x64xf32>
    %161 = arith.maximumf %159, %160 : vector<8x64xf32>
    %c0_114 = arith.constant 0 : index
    %c0_115 = arith.constant 0 : index
    %162 = vector.load %arg17[%c0_114, %c0_115] : memref<64x16xf32, #tpu.memory_space<vmem>>, vector<64x16xf32>
    %c0_116 = arith.constant 0 : index
    %c9_117 = arith.constant 9 : index
    %163 = vector.load %arg20[%c0_116, %c9_117] : memref<8x82xf32, #tpu.memory_space<vmem>>, vector<8x64xf32>
    tpu.vector_store %arg20[%c0_116, %c9_117], %161 {strides = array<i32>} : memref<8x82xf32, #tpu.memory_space<vmem>>, vector<8x64xf32>,
    %c0_118 = arith.constant 0 : index
    %c0_119 = arith.constant 0 : index
    %164 = vector.load %arg20[%c0_118, %c0_119] : memref<8x82xf32, #tpu.memory_space<vmem>>, vector<8x64xf32>
    %cst_120 = arith.constant 0.000000e+00 : f32
    %165 = vector.shape_cast %75 : vector<1x64xi1> to vector<1x64xi1>
    %166 = vector.broadcast %165 : vector<1x64xi1> to vector<8x64xi1>
    %167 = vector.broadcast %cst_120 : f32 to vector<8x64xf32>
    %168 = arith.select %166, %164, %167 : vector<8x64xi1>, vector<8x64xf32>
    %c0_121 = arith.constant 0 : index
    %c1_122 = arith.constant 1 : index
    %169 = vector.load %arg20[%c0_121, %c1_122] : memref<8x82xf32, #tpu.memory_space<vmem>>, vector<8x64xf32>
    %c0_123 = arith.constant 0 : index
    %c2_124 = arith.constant 2 : index
    %170 = vector.load %arg20[%c0_123, %c2_124] : memref<8x82xf32, #tpu.memory_space<vmem>>, vector<8x64xf32>
    %cst_125 = arith.constant 0.000000e+00 : f32
    %171 = vector.shape_cast %77 : vector<1x64xi1> to vector<1x64xi1>
    %172 = vector.broadcast %171 : vector<1x64xi1> to vector<8x64xi1>
    %173 = vector.broadcast %cst_125 : f32 to vector<8x64xf32>
    %174 = arith.select %172, %170, %173 : vector<8x64xi1>, vector<8x64xf32>
    %c0_126 = arith.constant 0 : index
    %c8_127 = arith.constant 8 : index
    %175 = vector.load %arg20[%c0_126, %c8_127] : memref<8x82xf32, #tpu.memory_space<vmem>>, vector<8x64xf32>
    %cst_128 = arith.constant 0.000000e+00 : f32
    %176 = vector.shape_cast %75 : vector<1x64xi1> to vector<1x64xi1>
    %177 = vector.broadcast %176 : vector<1x64xi1> to vector<8x64xi1>
    %178 = vector.broadcast %cst_128 : f32 to vector<8x64xf32>
    %179 = arith.select %177, %175, %178 : vector<8x64xi1>, vector<8x64xf32>
    %c0_129 = arith.constant 0 : index
    %c9_130 = arith.constant 9 : index
    %180 = vector.load %arg20[%c0_129, %c9_130] : memref<8x82xf32, #tpu.memory_space<vmem>>, vector<8x64xf32>
    %c0_131 = arith.constant 0 : index
    %c10_132 = arith.constant 10 : index
    %181 = vector.load %arg20[%c0_131, %c10_132] : memref<8x82xf32, #tpu.memory_space<vmem>>, vector<8x64xf32>
    %cst_133 = arith.constant 0.000000e+00 : f32
    %182 = vector.shape_cast %77 : vector<1x64xi1> to vector<1x64xi1>
    %183 = vector.broadcast %182 : vector<1x64xi1> to vector<8x64xi1>
    %184 = vector.broadcast %cst_133 : f32 to vector<8x64xf32>
    %185 = arith.select %183, %181, %184 : vector<8x64xi1>, vector<8x64xf32>
    %c0_134 = arith.constant 0 : index
    %c16_135 = arith.constant 16 : index
    %186 = vector.load %arg20[%c0_134, %c16_135] : memref<8x82xf32, #tpu.memory_space<vmem>>, vector<8x64xf32>
    %cst_136 = arith.constant 0.000000e+00 : f32
    %187 = vector.shape_cast %75 : vector<1x64xi1> to vector<1x64xi1>
    %188 = vector.broadcast %187 : vector<1x64xi1> to vector<8x64xi1>
    %189 = vector.broadcast %cst_136 : f32 to vector<8x64xf32>
    %190 = arith.select %188, %186, %189 : vector<8x64xi1>, vector<8x64xf32>
    %c0_137 = arith.constant 0 : index
    %c17_138 = arith.constant 17 : index
    %191 = vector.load %arg20[%c0_137, %c17_138] : memref<8x82xf32, #tpu.memory_space<vmem>>, vector<8x64xf32>
    %c0_139 = arith.constant 0 : index
    %c18_140 = arith.constant 18 : index
    %192 = vector.load %arg20[%c0_139, %c18_140] : memref<8x82xf32, #tpu.memory_space<vmem>>, vector<8x64xf32>
    %cst_141 = arith.constant 0.000000e+00 : f32
    %193 = vector.shape_cast %77 : vector<1x64xi1> to vector<1x64xi1>
    %194 = vector.broadcast %193 : vector<1x64xi1> to vector<8x64xi1>
    %195 = vector.broadcast %cst_141 : f32 to vector<8x64xf32>
    %196 = arith.select %194, %192, %195 : vector<8x64xi1>, vector<8x64xf32>
    %197 = tpu.concatenate %168, %169, %174, %179, %180, %185, %190, %191, %196 in 0 : vector<8x64xf32>, vector<8x64xf32>, vector<8x64xf32>, vector<8x64xf32>, vector<8x64xf32>, vector<8x64xf32>, vector<8x64xf32>, vector<8x64xf32>, vector<8x64xf32> -> vector<72x64xf32>
    %c0_142 = arith.constant 0 : index
    %c0_143 = arith.constant 0 : index
    %198 = vector.load %arg8[%c0_142, %c0_143] : memref<16x72xf32, #tpu.memory_space<vmem>>, vector<16x72xf32>
    %cst_144 = arith.constant dense<0.000000e+00> : vector<16x64xf32>
    %199 = tpu.matmul %198, %197, %cst_144 {dimension_numbers = #tpu.dot_dimension_numbers<[1], [0], [0], [1], [0, 0, 1, 1], [], []>} : vector<16x72xf32>, vector<72x64xf32>, vector<16x64xf32> -> vector<16x64xf32>
    %c0_145 = arith.constant 0 : index
    %c0_146 = arith.constant 0 : index
    %200 = vector.load %arg9[%c0_145, %c0_146] : memref<16x1xf32, #tpu.memory_space<vmem>>, vector<16x1xf32>
    %201 = vector.broadcast %200 : vector<16x1xf32> to vector<16x64xf32>
    %202 = arith.addf %199, %201 : vector<16x64xf32>
    %cst_147 = arith.constant 0.000000e+00 : f32
    %203 = vector.broadcast %cst_147 : f32 to vector<16x64xf32>
    %204 = arith.maximumf %202, %203 : vector<16x64xf32>
    %cst_148 = arith.constant dense<0.000000e+00> : vector<16x16xf32>
    %205 = tpu.matmul %204, %162, %cst_148 {dimension_numbers = #tpu.dot_dimension_numbers<[1], [0], [0], [1], [0, 0, 1, 1], [], []>} : vector<16x64xf32>, vector<64x16xf32>, vector<16x16xf32> -> vector<16x16xf32>
    %cst_149 = arith.constant dense<0.000000e+00> : vector<8x16xf32>
    %206 = tpu.matmul %161, %162, %cst_149 {dimension_numbers = #tpu.dot_dimension_numbers<[1], [0], [0], [1], [0, 0, 1, 1], [], []>} : vector<8x64xf32>, vector<64x16xf32>, vector<8x16xf32> -> vector<8x16xf32>
    %c0_150 = arith.constant 0 : index
    %c0_151 = arith.constant 0 : index
    %207 = vector.load %arg12[%c0_150, %c0_151] : memref<16x8xf32, #tpu.memory_space<vmem>>, vector<16x8xf32>
    %cst_152 = arith.constant dense<0.000000e+00> : vector<16x16xf32>
    %208 = tpu.matmul %207, %206, %cst_152 {dimension_numbers = #tpu.dot_dimension_numbers<[1], [0], [0], [1], [0, 0, 1, 1], [], []>} : vector<16x8xf32>, vector<8x16xf32>, vector<16x16xf32> -> vector<16x16xf32>
    %c0_153 = arith.constant 0 : index
    %c0_154 = arith.constant 0 : index
    %209 = vector.load %arg13[%c0_153, %c0_154] : memref<16x1xf32, #tpu.memory_space<vmem>>, vector<16x1xf32>
    %210 = vector.broadcast %209 : vector<16x1xf32> to vector<16x16xf32>
    %211 = arith.addf %208, %210 : vector<16x16xf32>
    %c0_155 = arith.constant 0 : index
    %c5 = arith.constant 5 : index
    %212 = vector.load %arg21[%c0_155, %c5] : memref<16x26xf32, #tpu.memory_space<vmem>>, vector<16x16xf32>
    tpu.vector_store %arg21[%c0_155, %c5], %205 {strides = array<i32>} : memref<16x26xf32, #tpu.memory_space<vmem>>, vector<16x16xf32>,
    %213 = tpu.iota {dimensions = array<i32: 1>} : vector<1x16xi32>
    %c3_i32 = arith.constant 3 : i32
    %214 = vector.broadcast %c3_i32 : i32 to vector<1x16xi32>
    %215 = arith.andi %213, %214 : vector<1x16xi32>
    %c0_i32_156 = arith.constant 0 : i32
    %216 = vector.broadcast %c0_i32_156 : i32 to vector<1x16xi32>
    %217 = arith.cmpi ne, %215, %216 : vector<1x16xi32>
    %c3_i32_157 = arith.constant 3 : i32
    %218 = vector.broadcast %c3_i32_157 : i32 to vector<1x16xi32>
    %219 = arith.cmpi ne, %215, %218 : vector<1x16xi32>
    %c0_158 = arith.constant 0 : index
    %c0_159 = arith.constant 0 : index
    %220 = vector.load %arg21[%c0_158, %c0_159] : memref<16x26xf32, #tpu.memory_space<vmem>>, vector<16x16xf32>
    %cst_160 = arith.constant 0.000000e+00 : f32
    %221 = vector.shape_cast %217 : vector<1x16xi1> to vector<1x16xi1>
    %222 = vector.broadcast %221 : vector<1x16xi1> to vector<16x16xi1>
    %223 = vector.broadcast %cst_160 : f32 to vector<16x16xf32>
    %224 = arith.select %222, %220, %223 : vector<16x16xi1>, vector<16x16xf32>
    %c0_161 = arith.constant 0 : index
    %c1_162 = arith.constant 1 : index
    %225 = vector.load %arg21[%c0_161, %c1_162] : memref<16x26xf32, #tpu.memory_space<vmem>>, vector<16x16xf32>
    %c0_163 = arith.constant 0 : index
    %c2_164 = arith.constant 2 : index
    %226 = vector.load %arg21[%c0_163, %c2_164] : memref<16x26xf32, #tpu.memory_space<vmem>>, vector<16x16xf32>
    %cst_165 = arith.constant 0.000000e+00 : f32
    %227 = vector.shape_cast %219 : vector<1x16xi1> to vector<1x16xi1>
    %228 = vector.broadcast %227 : vector<1x16xi1> to vector<16x16xi1>
    %229 = vector.broadcast %cst_165 : f32 to vector<16x16xf32>
    %230 = arith.select %228, %226, %229 : vector<16x16xi1>, vector<16x16xf32>
    %c0_166 = arith.constant 0 : index
    %c4 = arith.constant 4 : index
    %231 = vector.load %arg21[%c0_166, %c4] : memref<16x26xf32, #tpu.memory_space<vmem>>, vector<16x16xf32>
    %cst_167 = arith.constant 0.000000e+00 : f32
    %232 = vector.shape_cast %217 : vector<1x16xi1> to vector<1x16xi1>
    %233 = vector.broadcast %232 : vector<1x16xi1> to vector<16x16xi1>
    %234 = vector.broadcast %cst_167 : f32 to vector<16x16xf32>
    %235 = arith.select %233, %231, %234 : vector<16x16xi1>, vector<16x16xf32>
    %c0_168 = arith.constant 0 : index
    %c5_169 = arith.constant 5 : index
    %236 = vector.load %arg21[%c0_168, %c5_169] : memref<16x26xf32, #tpu.memory_space<vmem>>, vector<16x16xf32>
    %c0_170 = arith.constant 0 : index
    %c6 = arith.constant 6 : index
    %237 = vector.load %arg21[%c0_170, %c6] : memref<16x26xf32, #tpu.memory_space<vmem>>, vector<16x16xf32>
    %cst_171 = arith.constant 0.000000e+00 : f32
    %238 = vector.shape_cast %219 : vector<1x16xi1> to vector<1x16xi1>
    %239 = vector.broadcast %238 : vector<1x16xi1> to vector<16x16xi1>
    %240 = vector.broadcast %cst_171 : f32 to vector<16x16xf32>
    %241 = arith.select %239, %237, %240 : vector<16x16xi1>, vector<16x16xf32>
    %c0_172 = arith.constant 0 : index
    %c8_173 = arith.constant 8 : index
    %242 = vector.load %arg21[%c0_172, %c8_173] : memref<16x26xf32, #tpu.memory_space<vmem>>, vector<16x16xf32>
    %cst_174 = arith.constant 0.000000e+00 : f32
    %243 = vector.shape_cast %217 : vector<1x16xi1> to vector<1x16xi1>
    %244 = vector.broadcast %243 : vector<1x16xi1> to vector<16x16xi1>
    %245 = vector.broadcast %cst_174 : f32 to vector<16x16xf32>
    %246 = arith.select %244, %242, %245 : vector<16x16xi1>, vector<16x16xf32>
    %c0_175 = arith.constant 0 : index
    %c9_176 = arith.constant 9 : index
    %247 = vector.load %arg21[%c0_175, %c9_176] : memref<16x26xf32, #tpu.memory_space<vmem>>, vector<16x16xf32>
    %c0_177 = arith.constant 0 : index
    %c10_178 = arith.constant 10 : index
    %248 = vector.load %arg21[%c0_177, %c10_178] : memref<16x26xf32, #tpu.memory_space<vmem>>, vector<16x16xf32>
    %cst_179 = arith.constant 0.000000e+00 : f32
    %249 = vector.shape_cast %219 : vector<1x16xi1> to vector<1x16xi1>
    %250 = vector.broadcast %249 : vector<1x16xi1> to vector<16x16xi1>
    %251 = vector.broadcast %cst_179 : f32 to vector<16x16xf32>
    %252 = arith.select %250, %248, %251 : vector<16x16xi1>, vector<16x16xf32>
    %253 = tpu.concatenate %224, %225, %230, %235, %236, %241, %246, %247, %252 in 0 : vector<16x16xf32>, vector<16x16xf32>, vector<16x16xf32>, vector<16x16xf32>, vector<16x16xf32>, vector<16x16xf32>, vector<16x16xf32>, vector<16x16xf32>, vector<16x16xf32> -> vector<144x16xf32>
    %c0_180 = arith.constant 0 : index
    %c0_181 = arith.constant 0 : index
    %254 = vector.load %arg10[%c0_180, %c0_181] : memref<16x144xf32, #tpu.memory_space<vmem>>, vector<16x144xf32>
    %cst_182 = arith.constant dense<0.000000e+00> : vector<16x16xf32>
    %255 = tpu.matmul %254, %253, %cst_182 {dimension_numbers = #tpu.dot_dimension_numbers<[1], [0], [0], [1], [0, 0, 1, 1], [], []>} : vector<16x144xf32>, vector<144x16xf32>, vector<16x16xf32> -> vector<16x16xf32>
    %c0_183 = arith.constant 0 : index
    %c0_184 = arith.constant 0 : index
    %256 = vector.load %arg11[%c0_183, %c0_184] : memref<16x1xf32, #tpu.memory_space<vmem>>, vector<16x1xf32>
    %257 = vector.broadcast %256 : vector<16x1xf32> to vector<16x16xf32>
    %258 = arith.addf %255, %257 : vector<16x16xf32>
    %259 = arith.addf %258, %211 : vector<16x16xf32>
    %cst_185 = arith.constant 0.000000e+00 : f32
    %260 = vector.broadcast %cst_185 : f32 to vector<16x16xf32>
    %261 = arith.maximumf %259, %260 : vector<16x16xf32>
    %c0_186 = arith.constant 0 : index
    %c0_187 = arith.constant 0 : index
    %262 = vector.load %arg14[%c0_186, %c0_187] : memref<32x16xf32, #tpu.memory_space<vmem>>, vector<32x16xf32>
    %cst_188 = arith.constant dense<0.000000e+00> : vector<32x16xf32>
    %263 = tpu.matmul %262, %261, %cst_188 {dimension_numbers = #tpu.dot_dimension_numbers<[1], [0], [0], [1], [0, 0, 1, 1], [], []>} : vector<32x16xf32>, vector<16x16xf32>, vector<32x16xf32> -> vector<32x16xf32>
    %c0_189 = arith.constant 0 : index
    %c0_190 = arith.constant 0 : index
    %264 = vector.load %arg15[%c0_189, %c0_190] : memref<32x1xf32, #tpu.memory_space<vmem>>, vector<32x1xf32>
    %265 = vector.broadcast %264 : vector<32x1xf32> to vector<32x16xf32>
    %266 = arith.addf %263, %265 : vector<32x16xf32>
    %cst_191 = arith.constant 0.000000e+00 : f32
    %267 = vector.broadcast %cst_191 : f32 to vector<32x16xf32>
    %268 = arith.maximumf %266, %267 : vector<32x16xf32>
    %cst_192 = arith.constant dense<0.000000e+00> : vector<32xf32>
    %269 = vector.multi_reduction <add>, %268, %cst_192 [1] : vector<32x16xf32> to vector<32xf32>
    %270 = vector.shape_cast %269 : vector<32xf32> to vector<32x1xf32>
    %cst_193 = arith.constant 1.600000e+01 : f32
    %271 = vector.broadcast %cst_193 : f32 to vector<32x1xf32>
    %272 = arith.divf %270, %271 : vector<32x1xf32>
    %c0_194 = arith.constant 0 : index
    %c0_195 = arith.constant 0 : index
    %c0_196 = arith.constant 0 : index
    %273 = vector.load %arg18[%c0_194, %c0_195, %c0_196] : memref<1x32x1xf32, #tpu.memory_space<vmem>>, vector<1x32x1xf32>
    %274 = vector.shape_cast %273 : vector<1x32x1xf32> to vector<32x1xf32>
    %275 = vector.shape_cast %272 : vector<32x1xf32> to vector<1x32x1xf32>
    tpu.vector_store %arg18[%c0_194, %c0_195, %c0_196], %275 {strides = array<i32>} : memref<1x32x1xf32, #tpu.memory_space<vmem>>, vector<1x32x1xf32>,
    return
  }
  func.func @transform_0(%arg0: i32) -> (i32, i32, i32) {
    %c0_i32 = arith.constant 0 : i32
    %c0_i32_0 = arith.constant 0 : i32
    %c0_i32_1 = arith.constant 0 : i32
    return %arg0, %c0_i32, %c0_i32_0 : i32, i32, i32
  }
  func.func @transform_1(%arg0: i32) -> (i32, i32) {
    %c0_i32 = arith.constant 0 : i32
    %c0_i32_0 = arith.constant 0 : i32
    %c0_i32_1 = arith.constant 0 : i32
    return %c0_i32, %c0_i32_0 : i32, i32
  }
  func.func @transform_2(%arg0: i32) -> (i32, i32) {
    %c0_i32 = arith.constant 0 : i32
    %c0_i32_0 = arith.constant 0 : i32
    %c0_i32_1 = arith.constant 0 : i32
    return %c0_i32, %c0_i32_0 : i32, i32
  }
  func.func @transform_3(%arg0: i32) -> (i32, i32) {
    %c0_i32 = arith.constant 0 : i32
    %c0_i32_0 = arith.constant 0 : i32
    %c0_i32_1 = arith.constant 0 : i32
    return %c0_i32, %c0_i32_0 : i32, i32
  }
  func.func @transform_4(%arg0: i32) -> (i32, i32) {
    %c0_i32 = arith.constant 0 : i32
    %c0_i32_0 = arith.constant 0 : i32
    %c0_i32_1 = arith.constant 0 : i32
    return %c0_i32, %c0_i32_0 : i32, i32
  }
  func.func @transform_5(%arg0: i32) -> (i32, i32) {
    %c0_i32 = arith.constant 0 : i32
    %c0_i32_0 = arith.constant 0 : i32
    %c0_i32_1 = arith.constant 0 : i32
    return %c0_i32, %c0_i32_0 : i32, i32
  }
  func.func @transform_6(%arg0: i32) -> (i32, i32) {
    %c0_i32 = arith.constant 0 : i32
    %c0_i32_0 = arith.constant 0 : i32
    %c0_i32_1 = arith.constant 0 : i32
    return %c0_i32, %c0_i32_0 : i32, i32
  }
  func.func @transform_7(%arg0: i32) -> (i32, i32) {
    %c0_i32 = arith.constant 0 : i32
    %c0_i32_0 = arith.constant 0 : i32
    %c0_i32_1 = arith.constant 0 : i32
    return %c0_i32, %c0_i32_0 : i32, i32
  }
  func.func @transform_8(%arg0: i32) -> (i32, i32) {
    %c0_i32 = arith.constant 0 : i32
    %c0_i32_0 = arith.constant 0 : i32
    %c0_i32_1 = arith.constant 0 : i32
    return %c0_i32, %c0_i32_0 : i32, i32
  }
  func.func @transform_9(%arg0: i32) -> (i32, i32) {
    %c0_i32 = arith.constant 0 : i32
    %c0_i32_0 = arith.constant 0 : i32
    %c0_i32_1 = arith.constant 0 : i32
    return %c0_i32, %c0_i32_0 : i32, i32
  }
  func.func @transform_10(%arg0: i32) -> (i32, i32) {
    %c0_i32 = arith.constant 0 : i32
    %c0_i32_0 = arith.constant 0 : i32
    %c0_i32_1 = arith.constant 0 : i32
    return %c0_i32, %c0_i32_0 : i32, i32
  }
  func.func @transform_11(%arg0: i32) -> (i32, i32) {
    %c0_i32 = arith.constant 0 : i32
    %c0_i32_0 = arith.constant 0 : i32
    %c0_i32_1 = arith.constant 0 : i32
    return %c0_i32, %c0_i32_0 : i32, i32
  }
  func.func @transform_12(%arg0: i32) -> (i32, i32) {
    %c0_i32 = arith.constant 0 : i32
    %c0_i32_0 = arith.constant 0 : i32
    %c0_i32_1 = arith.constant 0 : i32
    return %c0_i32, %c0_i32_0 : i32, i32
  }
  func.func @transform_13(%arg0: i32) -> (i32, i32) {
    %c0_i32 = arith.constant 0 : i32
    %c0_i32_0 = arith.constant 0 : i32
    %c0_i32_1 = arith.constant 0 : i32
    return %c0_i32, %c0_i32_0 : i32, i32
  }
  func.func @transform_14(%arg0: i32) -> (i32, i32) {
    %c0_i32 = arith.constant 0 : i32
    %c0_i32_0 = arith.constant 0 : i32
    %c0_i32_1 = arith.constant 0 : i32
    return %c0_i32, %c0_i32_0 : i32, i32
  }
  func.func @transform_15(%arg0: i32) -> (i32, i32) {
    %c0_i32 = arith.constant 0 : i32
    %c0_i32_0 = arith.constant 0 : i32
    %c0_i32_1 = arith.constant 0 : i32
    return %c0_i32, %c0_i32_0 : i32, i32
  }
  func.func @transform_16(%arg0: i32) -> (i32, i32) {
    %c0_i32 = arith.constant 0 : i32
    %c0_i32_0 = arith.constant 0 : i32
    %c0_i32_1 = arith.constant 0 : i32
    return %c0_i32, %c0_i32_0 : i32, i32
  }
  func.func @transform_17(%arg0: i32) -> (i32, i32, i32) {
    %c0_i32 = arith.constant 0 : i32
    %c0_i32_0 = arith.constant 0 : i32
    %c0_i32_1 = arith.constant 0 : i32
    return %arg0, %c0_i32, %c0_i32_0 : i32, i32, i32
  }
}

</mosaic_0001>

<llo_original>
// kernel: resnet18_forward.1
$region0: #{resnet18_forward.1}
  #allocation0 [shape = 'u32[]', space=smem, size = 0x4, offset = 0x4, fixed_abs, tag = 'smem constant byte address 0x4 - core index']
  #allocation1 [shape = 'u32[72,128]{1,0:T(1,128)}', space=vmem, size = 0x9000, scoped, tag = 'internal scratch']
  #allocation2 [shape = 'f32[8,290]{1,0:T(8,128)}', space=vmem, size = 0x3000, scoped, tag = 'scratch operand']
  #allocation3 [shape = 'f32[8,82]{1,0:T(8,128)}', space=vmem, size = 0x1000, scoped, tag = 'scratch operand']
  #allocation4 [shape = 'f32[16,26]{1,0:T(8,128)}', space=vmem, size = 0x2000, scoped, tag = 'scratch operand']
  %s0 = inlined_call_operand.vmem [shape: f32[2,8,256], index: 0, kind: input, shape index: {}]
  %s1 = inlined_call_operand.vmem [shape: f32[8,72], index: 1, kind: input, shape index: {}]
  %s2 = inlined_call_operand.vmem [shape: f32[8,1], index: 2, kind: input, shape index: {}]
  %s3 = inlined_call_operand.vmem [shape: f32[8,72], index: 3, kind: input, shape index: {}]
  %s4 = inlined_call_operand.vmem [shape: f32[8,1], index: 4, kind: input, shape index: {}]
  %s5 = inlined_call_operand.vmem [shape: f32[8,72], index: 5, kind: input, shape index: {}]
  %s6 = inlined_call_operand.vmem [shape: f32[8,1], index: 6, kind: input, shape index: {}]
  %s7 = inlined_call_operand.vmem [shape: f32[16,72], index: 7, kind: input, shape index: {}]
  %s8 = inlined_call_operand.vmem [shape: f32[16,1], index: 8, kind: input, shape index: {}]
  %s9 = inlined_call_operand.vmem [shape: f32[16,144], index: 9, kind: input, shape index: {}]
  %s10 = inlined_call_operand.vmem [shape: f32[16,1], index: 10, kind: input, shape index: {}]
  %s11 = inlined_call_operand.vmem [shape: f32[16,8], index: 11, kind: input, shape index: {}]
  %s12 = inlined_call_operand.vmem [shape: f32[16,1], index: 12, kind: input, shape index: {}]
  %s13 = inlined_call_operand.vmem [shape: f32[32,16], index: 13, kind: input, shape index: {}]
  %s14 = inlined_call_operand.vmem [shape: f32[32,1], index: 14, kind: input, shape index: {}]
  %s15 = inlined_call_operand.vmem [shape: f32[256,64], index: 15, kind: input, shape index: {}]
  %s16 = inlined_call_operand.vmem [shape: f32[64,16], index: 16, kind: input, shape index: {}]
  %s17 = inlined_call_operand.vmem [shape: f32[2,32,1], index: 17, kind: output, shape index: {}]
  %s18 = sld [smem:[#allocation0]]
  $region101: #{resnet18_forward.1} parent=0
    _
  %s20 = ssub.s32 1, %s18
  %s21 = scalar_select 0, %s20, %s18
  loop: start=0, step=1, limit=4
  $region2: #{resnet18_forward.1} parent=0 // loop_pre_header
    _
  $region3: #{resnet18_forward.1} parent=0 // loop_header
    %s23 = sphi 0, %s27
    %p24 = scmp.ge.s32.totalorder %s23, 4
    %s33 = sphi 0, %s35
    %s36 = sphi 0, %s33
    %s37 = sphi 0, %s36
    %s53 = sphi 0, %s37
    %s57 = sphi 0, %s57
    %s59 = sphi 0, %s57
    %s60 = sphi 0, %s59
    %s74 = sphi 0, %s60
    %s78 = sphi 0, %s78
    %s80 = sphi 0, %s78
    %s81 = sphi 0, %s80
    %s95 = sphi 0, %s81
    %s99 = sphi 0, %s99
    %s101 = sphi 0, %s99
    %s102 = sphi 0, %s101
    %s116 = sphi 0, %s102
    %s120 = sphi 0, %s120
    %s122 = sphi 0, %s120
    %s123 = sphi 0, %s122
    %s137 = sphi 0, %s123
    %s141 = sphi 0, %s141
    %s143 = sphi 0, %s141
    %s144 = sphi 0, %s143
    %s158 = sphi 0, %s144
    %s162 = sphi 0, %s162
    %s164 = sphi 0, %s162
    %s165 = sphi 0, %s164
    %s179 = sphi 0, %s165
    %s183 = sphi 0, %s183
    %s185 = sphi 0, %s183
    %s186 = sphi 0, %s185
    %s200 = sphi 0, %s186
    %s204 = sphi 0, %s204
    %s206 = sphi 0, %s204
    %s207 = sphi 0, %s206
    %s221 = sphi 0, %s207
    %s225 = sphi 0, %s225
    %s227 = sphi 0, %s225
    %s228 = sphi 0, %s227
    %s242 = sphi 0, %s228
    %s246 = sphi 0, %s246
    %s248 = sphi 0, %s246
    %s249 = sphi 0, %s248
    %s263 = sphi 0, %s249
    %s267 = sphi 0, %s267
    %s269 = sphi 0, %s267
    %s270 = sphi 0, %s269
    %s284 = sphi 0, %s270
    %s288 = sphi 0, %s288
    %s290 = sphi 0, %s288
    %s291 = sphi 0, %s290
    %s305 = sphi 0, %s291
    %s309 = sphi 0, %s309
    %s311 = sphi 0, %s309
    %s312 = sphi 0, %s311
    %s326 = sphi 0, %s312
    %s330 = sphi 0, %s330
    %s332 = sphi 0, %s330
    %s333 = sphi 0, %s332
    %s347 = sphi 0, %s333
    %s351 = sphi 0, %s351
    %s353 = sphi 0, %s351
    %s354 = sphi 0, %s353
    %s368 = sphi 0, %s354
    %s372 = sphi 0, %s372
    %s374 = sphi 0, %s372
    %s375 = sphi 0, %s374
    %s389 = sphi 0, %s375
    %s395 = sphi 0, %s397
    %s398 = sphi 0, %s395
    %s399 = sphi 0, %s398
    %s415 = sphi 0, %s399
  $region4: #{resnet18_forward.1} parent=0 // loop_header_branch
    %26 = sbr.rel (%p24) target = $region8
  $region5: #{resnet18_forward.1} parent=0 // loop_body
    %s28 = ssub.s32 %s23, 1
    %s29 = ssub.s32 %s23, 2
    %s30 = sadd.s32 %s23, 1
    %s31 = ssub.s32 %s23, %s30
    %p32 = scmp.eq.s32.totalorder %s31, 0
    %s34 = sadd.s32 %s33, 1
    %s35 = scalar_select %p32, %s33, %s34
    %p38 = pneg %p32
    %p39 = scmp.eq.s32.totalorder %s23, 1
    %p40 = por %p38, %p39
    %p41 = scmp.ne.s32.totalorder %s33, %s36
    %p42 = scmp.eq.s32.totalorder %s23, 0
    %p43 = por %p41, %p42
    %p44 = scmp.ne.s32.totalorder %s33, %s36
    %p45 = scmp.eq.s32.totalorder %s28, 1
    %p46 = por %p44, %p45
    %p47 = scmp.ne.s32.totalorder %s36, %s37
    %p48 = scmp.eq.s32.totalorder %s28, 0
    %p49 = por %p47, %p48
    %p50 = scmp.ne.s32.totalorder %s36, %s37
    %p51 = scmp.eq.s32.totalorder %s29, 1
    %p52 = por %p50, %p51
    %p54 = scmp.ne.s32.totalorder %s37, %s53
    %p55 = scmp.eq.s32.totalorder %s29, 0
    %p56 = por %p54, %p55
    %s58 = sadd.s32 %s57, 1
    %p61 = scmp.eq.s32.totalorder %s23, 1
    %p62 = scmp.ne.s32.totalorder %s57, %s59
    %p63 = scmp.eq.s32.totalorder %s23, 0
    %p64 = por %p62, %p63
    %p65 = scmp.ne.s32.totalorder %s57, %s59
    %p66 = scmp.eq.s32.totalorder %s28, 1
    %p67 = por %p65, %p66
    %p68 = scmp.ne.s32.totalorder %s59, %s60
    %p69 = scmp.eq.s32.totalorder %s28, 0
    %p70 = por %p68, %p69
    %p71 = scmp.ne.s32.totalorder %s59, %s60
    %p72 = scmp.eq.s32.totalorder %s29, 1
    %p73 = por %p71, %p72
    %p75 = scmp.ne.s32.totalorder %s60, %s74
    %p76 = scmp.eq.s32.totalorder %s29, 0
    %p77 = por %p75, %p76
    %s79 = sadd.s32 %s78, 1
    %p82 = scmp.eq.s32.totalorder %s23, 1
    %p83 = scmp.ne.s32.totalorder %s78, %s80
    %p84 = scmp.eq.s32.totalorder %s23, 0
    %p85 = por %p83, %p84
    %p86 = scmp.ne.s32.totalorder %s78, %s80
    %p87 = scmp.eq.s32.totalorder %s28, 1
    %p88 = por %p86, %p87
    %p89 = scmp.ne.s32.totalorder %s80, %s81
    %p90 = scmp.eq.s32.totalorder %s28, 0
    %p91 = por %p89, %p90
    %p92 = scmp.ne.s32.totalorder %s80, %s81
    %p93 = scmp.eq.s32.totalorder %s29, 1
    %p94 = por %p92, %p93
    %p96 = scmp.ne.s32.totalorder %s81, %s95
    %p97 = scmp.eq.s32.totalorder %s29, 0
    %p98 = por %p96, %p97
    %s100 = sadd.s32 %s99, 1
    %p103 = scmp.eq.s32.totalorder %s23, 1
    %p104 = scmp.ne.s32.totalorder %s99, %s101
    %p105 = scmp.eq.s32.totalorder %s23, 0
    %p106 = por %p104, %p105
    %p107 = scmp.ne.s32.totalorder %s99, %s101
    %p108 = scmp.eq.s32.totalorder %s28, 1
    %p109 = por %p107, %p108
    %p110 = scmp.ne.s32.totalorder %s101, %s102
    %p111 = scmp.eq.s32.totalorder %s28, 0
    %p112 = por %p110, %p111
    %p113 = scmp.ne.s32.totalorder %s101, %s102
    %p114 = scmp.eq.s32.totalorder %s29, 1
    %p115 = por %p113, %p114
    %p117 = scmp.ne.s32.totalorder %s102, %s116
    %p118 = scmp.eq.s32.totalorder %s29, 0
    %p119 = por %p117, %p118
    %s121 = sadd.s32 %s120, 1
    %p124 = scmp.eq.s32.totalorder %s23, 1
    %p125 = scmp.ne.s32.totalorder %s120, %s122
    %p126 = scmp.eq.s32.totalorder %s23, 0
    %p127 = por %p125, %p126
    %p128 = scmp.ne.s32.totalorder %s120, %s122
    %p129 = scmp.eq.s32.totalorder %s28, 1
    %p130 = por %p128, %p129
    %p131 = scmp.ne.s32.totalorder %s122, %s123
    %p132 = scmp.eq.s32.totalorder %s28, 0
    %p133 = por %p131, %p132
    %p134 = scmp.ne.s32.totalorder %s122, %s123
    %p135 = scmp.eq.s32.totalorder %s29, 1
    %p136 = por %p134, %p135
    %p138 = scmp.ne.s32.totalorder %s123, %s137
    %p139 = scmp.eq.s32.totalorder %s29, 0
    %p140 = por %p138, %p139
    %s142 = sadd.s32 %s141, 1
    %p145 = scmp.eq.s32.totalorder %s23, 1
    %p146 = scmp.ne.s32.totalorder %s141, %s143
    %p147 = scmp.eq.s32.totalorder %s23, 0
    %p148 = por %p146, %p147
    %p149 = scmp.ne.s32.totalorder %s141, %s143
    %p150 = scmp.eq.s32.totalorder %s28, 1
    %p151 = por %p149, %p150
    %p152 = scmp.ne.s32.totalorder %s143, %s144
    %p153 = scmp.eq.s32.totalorder %s28, 0
    %p154 = por %p152, %p153
    %p155 = scmp.ne.s32.totalorder %s143, %s144
    %p156 = scmp.eq.s32.totalorder %s29, 1
    %p157 = por %p155, %p156
    %p159 = scmp.ne.s32.totalorder %s144, %s158
    %p160 = scmp.eq.s32.totalorder %s29, 0
    %p161 = por %p159, %p160
    %s163 = sadd.s32 %s162, 1
    %p166 = scmp.eq.s32.totalorder %s23, 1
    %p167 = scmp.ne.s32.totalorder %s162, %s164
    %p168 = scmp.eq.s32.totalorder %s23, 0
    %p169 = por %p167, %p168
    %p170 = scmp.ne.s32.totalorder %s162, %s164
    %p171 = scmp.eq.s32.totalorder %s28, 1
    %p172 = por %p170, %p171
    %p173 = scmp.ne.s32.totalorder %s164, %s165
    %p174 = scmp.eq.s32.totalorder %s28, 0
    %p175 = por %p173, %p174
    %p176 = scmp.ne.s32.totalorder %s164, %s165
    %p177 = scmp.eq.s32.totalorder %s29, 1
    %p178 = por %p176, %p177
    %p180 = scmp.ne.s32.totalorder %s165, %s179
    %p181 = scmp.eq.s32.totalorder %s29, 0
    %p182 = por %p180, %p181
    %s184 = sadd.s32 %s183, 1
    %p187 = scmp.eq.s32.totalorder %s23, 1
    %p188 = scmp.ne.s32.totalorder %s183, %s185
    %p189 = scmp.eq.s32.totalorder %s23, 0
    %p190 = por %p188, %p189
    %p191 = scmp.ne.s32.totalorder %s183, %s185
    %p192 = scmp.eq.s32.totalorder %s28, 1
    %p193 = por %p191, %p192
    %p194 = scmp.ne.s32.totalorder %s185, %s186
    %p195 = scmp.eq.s32.totalorder %s28, 0
    %p196 = por %p194, %p195
    %p197 = scmp.ne.s32.totalorder %s185, %s186
    %p198 = scmp.eq.s32.totalorder %s29, 1
    %p199 = por %p197, %p198
    %p201 = scmp.ne.s32.totalorder %s186, %s200
    %p202 = scmp.eq.s32.totalorder %s29, 0
    %p203 = por %p201, %p202
    %s205 = sadd.s32 %s204, 1
    %p208 = scmp.eq.s32.totalorder %s23, 1
    %p209 = scmp.ne.s32.totalorder %s204, %s206
    %p210 = scmp.eq.s32.totalorder %s23, 0
    %p211 = por %p209, %p210
    %p212 = scmp.ne.s32.totalorder %s204, %s206
    %p213 = scmp.eq.s32.totalorder %s28, 1
    %p214 = por %p212, %p213
    %p215 = scmp.ne.s32.totalorder %s206, %s207
    %p216 = scmp.eq.s32.totalorder %s28, 0
    %p217 = por %p215, %p216
    %p218 = scmp.ne.s32.totalorder %s206, %s207
    %p219 = scmp.eq.s32.totalorder %s29, 1
    %p220 = por %p218, %p219
    %p222 = scmp.ne.s32.totalorder %s207, %s221
    %p223 = scmp.eq.s32.totalorder %s29, 0
    %p224 = por %p222, %p223
    %s226 = sadd.s32 %s225, 1
    %p229 = scmp.eq.s32.totalorder %s23, 1
    %p230 = scmp.ne.s32.totalorder %s225, %s227
    %p231 = scmp.eq.s32.totalorder %s23, 0
    %p232 = por %p230, %p231
    %p233 = scmp.ne.s32.totalorder %s225, %s227
    %p234 = scmp.eq.s32.totalorder %s28, 1
    %p235 = por %p233, %p234
    %p236 = scmp.ne.s32.totalorder %s227, %s228
    %p237 = scmp.eq.s32.totalorder %s28, 0
    %p238 = por %p236, %p237
    %p239 = scmp.ne.s32.totalorder %s227, %s228
    %p240 = scmp.eq.s32.totalorder %s29, 1
    %p241 = por %p239, %p240
    %p243 = scmp.ne.s32.totalorder %s228, %s242
    %p244 = scmp.eq.s32.totalorder %s29, 0
    %p245 = por %p243, %p244
    %s247 = sadd.s32 %s246, 1
    %p250 = scmp.eq.s32.totalorder %s23, 1
    %p251 = scmp.ne.s32.totalorder %s246, %s248
    %p252 = scmp.eq.s32.totalorder %s23, 0
    %p253 = por %p251, %p252
    %p254 = scmp.ne.s32.totalorder %s246, %s248
    %p255 = scmp.eq.s32.totalorder %s28, 1
    %p256 = por %p254, %p255
    %p257 = scmp.ne.s32.totalorder %s248, %s249
    %p258 = scmp.eq.s32.totalorder %s28, 0
    %p259 = por %p257, %p258
    %p260 = scmp.ne.s32.totalorder %s248, %s249
    %p261 = scmp.eq.s32.totalorder %s29, 1
    %p262 = por %p260, %p261
    %p264 = scmp.ne.s32.totalorder %s249, %s263
    %p265 = scmp.eq.s32.totalorder %s29, 0
    %p266 = por %p264, %p265
    %s268 = sadd.s32 %s267, 1
    %p271 = scmp.eq.s32.totalorder %s23, 1
    %p272 = scmp.ne.s32.totalorder %s267, %s269
    %p273 = scmp.eq.s32.totalorder %s23, 0
    %p274 = por %p272, %p273
    %p275 = scmp.ne.s32.totalorder %s267, %s269
    %p276 = scmp.eq.s32.totalorder %s28, 1
    %p277 = por %p275, %p276
    %p278 = scmp.ne.s32.totalorder %s269, %s270
    %p279 = scmp.eq.s32.totalorder %s28, 0
    %p280 = por %p278, %p279
    %p281 = scmp.ne.s32.totalorder %s269, %s270
    %p282 = scmp.eq.s32.totalorder %s29, 1
    %p283 = por %p281, %p282
    %p285 = scmp.ne.s32.totalorder %s270, %s284
    %p286 = scmp.eq.s32.totalorder %s29, 0
    %p287 = por %p285, %p286
    %s289 = sadd.s32 %s288, 1
    %p292 = scmp.eq.s32.totalorder %s23, 1
    %p293 = scmp.ne.s32.totalorder %s288, %s290
    %p294 = scmp.eq.s32.totalorder %s23, 0
    %p295 = por %p293, %p294
    %p296 = scmp.ne.s32.totalorder %s288, %s290
    %p297 = scmp.eq.s32.totalorder %s28, 1
    %p298 = por %p296, %p297
    %p299 = scmp.ne.s32.totalorder %s290, %s291
    %p300 = scmp.eq.s32.totalorder %s28, 0
    %p301 = por %p299, %p300
    %p302 = scmp.ne.s32.totalorder %s290, %s291
    %p303 = scmp.eq.s32.totalorder %s29, 1
    %p304 = por %p302, %p303
    %p306 = scmp.ne.s32.totalorder %s291, %s305
    %p307 = scmp.eq.s32.totalorder %s29, 0
    %p308 = por %p306, %p307
    %s310 = sadd.s32 %s309, 1
    %p313 = scmp.eq.s32.totalorder %s23, 1
    %p314 = scmp.ne.s32.totalorder %s309, %s311
    %p315 = scmp.eq.s32.totalorder %s23, 0
    %p316 = por %p314, %p315
    %p317 = scmp.ne.s32.totalorder %s309, %s311
    %p318 = scmp.eq.s32.totalorder %s28, 1
    %p319 = por %p317, %p318
    %p320 = scmp.ne.s32.totalorder %s311, %s312
    %p321 = scmp.eq.s32.totalorder %s28, 0
    %p322 = por %p320, %p321
    %p323 = scmp.ne.s32.totalorder %s311, %s312
    %p324 = scmp.eq.s32.totalorder %s29, 1
    %p325 = por %p323, %p324
    %p327 = scmp.ne.s32.totalorder %s312, %s326
    %p328 = scmp.eq.s32.totalorder %s29, 0
    %p329 = por %p327, %p328
    %s331 = sadd.s32 %s330, 1
    %p334 = scmp.eq.s32.totalorder %s23, 1
    %p335 = scmp.ne.s32.totalorder %s330, %s332
    %p336 = scmp.eq.s32.totalorder %s23, 0
    %p337 = por %p335, %p336
    %p338 = scmp.ne.s32.totalorder %s330, %s332
    %p339 = scmp.eq.s32.totalorder %s28, 1
    %p340 = por %p338, %p339
    %p341 = scmp.ne.s32.totalorder %s332, %s333
    %p342 = scmp.eq.s32.totalorder %s28, 0
    %p343 = por %p341, %p342
    %p344 = scmp.ne.s32.totalorder %s332, %s333
    %p345 = scmp.eq.s32.totalorder %s29, 1
    %p346 = por %p344, %p345
    %p348 = scmp.ne.s32.totalorder %s333, %s347
    %p349 = scmp.eq.s32.totalorder %s29, 0
    %p350 = por %p348, %p349
    %s352 = sadd.s32 %s351, 1
    %p355 = scmp.eq.s32.totalorder %s23, 1
    %p356 = scmp.ne.s32.totalorder %s351, %s353
    %p357 = scmp.eq.s32.totalorder %s23, 0
    %p358 = por %p356, %p357
    %p359 = scmp.ne.s32.totalorder %s351, %s353
    %p360 = scmp.eq.s32.totalorder %s28, 1
    %p361 = por %p359, %p360
    %p362 = scmp.ne.s32.totalorder %s353, %s354
    %p363 = scmp.eq.s32.totalorder %s28, 0
    %p364 = por %p362, %p363
    %p365 = scmp.ne.s32.totalorder %s353, %s354
    %p366 = scmp.eq.s32.totalorder %s29, 1
    %p367 = por %p365, %p366
    %p369 = scmp.ne.s32.totalorder %s354, %s368
    %p370 = scmp.eq.s32.totalorder %s29, 0
    %p371 = por %p369, %p370
    %s373 = sadd.s32 %s372, 1
    %p376 = scmp.eq.s32.totalorder %s23, 1
    %p377 = scmp.ne.s32.totalorder %s372, %s374
    %p378 = scmp.eq.s32.totalorder %s23, 0
    %p379 = por %p377, %p378
    %p380 = scmp.ne.s32.totalorder %s372, %s374
    %p381 = scmp.eq.s32.totalorder %s28, 1
    %p382 = por %p380, %p381
    %p383 = scmp.ne.s32.totalorder %s374, %s375
    %p384 = scmp.eq.s32.totalorder %s28, 0
    %p385 = por %p383, %p384
    %p386 = scmp.ne.s32.totalorder %s374, %s375
    %p387 = scmp.eq.s32.totalorder %s29, 1
    %p388 = por %p386, %p387
    %p390 = scmp.ne.s32.totalorder %s375, %s389
    %p391 = scmp.eq.s32.totalorder %s29, 0
    %p392 = por %p390, %p391
    %s393 = ssub.s32 %s23, %s30
    %p394 = scmp.eq.s32.totalorder %s393, 0
    %s396 = sadd.s32 %s395, 1
    %s397 = scalar_select %p394, %s395, %s396
    %p400 = pneg %p394
    %p401 = scmp.eq.s32.totalorder %s23, 1
    %p402 = por %p400, %p401
    %p403 = scmp.ne.s32.totalorder %s395, %s398
    %p404 = scmp.eq.s32.totalorder %s23, 0
    %p405 = por %p403, %p404
    %p406 = scmp.ne.s32.totalorder %s395, %s398
    %p407 = scmp.eq.s32.totalorder %s28, 1
    %p408 = por %p406, %p407
    %p409 = scmp.ne.s32.totalorder %s398, %s399
    %p410 = scmp.eq.s32.totalorder %s28, 0
    %p411 = por %p409, %p410
    %p412 = scmp.ne.s32.totalorder %s398, %s399
    %p413 = scmp.eq.s32.totalorder %s29, 1
    %p414 = por %p412, %p413
    %p416 = scmp.ne.s32.totalorder %s399, %s415
    %p417 = scmp.eq.s32.totalorder %s29, 0
    %p418 = por %p416, %p417
    %p419 = scmp.le.s32.totalorder 1, %s23
    %p420 = scmp.lt.s32.totalorder %s23, 3
    %p421 = pnand %p419, %p420
    %p422 = pneg %p421
    // Predicated region
    $region9: #{resnet18_forward.1} parent=5 // pred_check
      _
    $region10: #{resnet18_forward.1} parent=5 // pred_check_branch
      %424 = sbr.rel (%p421) target = $region12
    $region11: #{resnet18_forward.1} parent=5 // pred_region
      %s425 = ssub.s32 %s23, 1
      // Predicated region
      $region13: #{resnet18_forward.1} parent=11 // pred_check
        %p426 = pneg %p70
      $region14: #{resnet18_forward.1} parent=11 // pred_check_branch
        %428 = sbr.rel (%p426) target = $region16
      $region15: #{resnet18_forward.1} parent=11 // pred_region
        _
      $region16: #{resnet18_forward.1} parent=11 // pred_fallthru
        _
      // Predicated region
      $region17: #{resnet18_forward.1} parent=11 // pred_check
        %p429 = pneg %p91
      $region18: #{resnet18_forward.1} parent=11 // pred_check_branch
        %431 = sbr.rel (%p429) target = $region20
      $region19: #{resnet18_forward.1} parent=11 // pred_region
        _
      $region20: #{resnet18_forward.1} parent=11 // pred_fallthru
        _
      // Predicated region
      $region21: #{resnet18_forward.1} parent=11 // pred_check
        %p432 = pneg %p112
      $region22: #{resnet18_forward.1} parent=11 // pred_check_branch
        %434 = sbr.rel (%p432) target = $region24
      $region23: #{resnet18_forward.1} parent=11 // pred_region
        _
      $region24: #{resnet18_forward.1} parent=11 // pred_fallthru
        _
      // Predicated region
      $region25: #{resnet18_forward.1} parent=11 // pred_check
        %p435 = pneg %p133
      $region26: #{resnet18_forward.1} parent=11 // pred_check_branch
        %437 = sbr.rel (%p435) target = $region28
      $region27: #{resnet18_forward.1} parent=11 // pred_region
        _
      $region28: #{resnet18_forward.1} parent=11 // pred_fallthru
        _
      // Predicated region
      $region29: #{resnet18_forward.1} parent=11 // pred_check
        %p438 = pneg %p154
      $region30: #{resnet18_forward.1} parent=11 // pred_check_branch
        %440 = sbr.rel (%p438) target = $region32
      $region31: #{resnet18_forward.1} parent=11 // pred_region
        _
      $region32: #{resnet18_forward.1} parent=11 // pred_fallthru
        _
      // Predicated region
      $region33: #{resnet18_forward.1} parent=11 // pred_check
        %p441 = pneg %p175
      $region34: #{resnet18_forward.1} parent=11 // pred_check_branch
        %443 = sbr.rel (%p441) target = $region36
      $region35: #{resnet18_forward.1} parent=11 // pred_region
        _
      $region36: #{resnet18_forward.1} parent=11 // pred_fallthru
        _
      // Predicated region
      $region37: #{resnet18_forward.1} parent=11 // pred_check
        %p444 = pneg %p196
      $region38: #{resnet18_forward.1} parent=11 // pred_check_branch
        %446 = sbr.rel (%p444) target = $region40
      $region39: #{resnet18_forward.1} parent=11 // pred_region
        _
      $region40: #{resnet18_forward.1} parent=11 // pred_fallthru
        _
      // Predicated region
      $region41: #{resnet18_forward.1} parent=11 // pred_check
        %p447 = pneg %p217
      $region42: #{resnet18_forward.1} parent=11 // pred_check_branch
        %449 = sbr.rel (%p447) target = $region44
      $region43: #{resnet18_forward.1} parent=11 // pred_region
        _
      $region44: #{resnet18_forward.1} parent=11 // pred_fallthru
        _
      // Predicated region
      $region45: #{resnet18_forward.1} parent=11 // pred_check
        %p450 = pneg %p238
      $region46: #{resnet18_forward.1} parent=11 // pred_check_branch
        %452 = sbr.rel (%p450) target = $region48
      $region47: #{resnet18_forward.1} parent=11 // pred_region
        _
      $region48: #{resnet18_forward.1} parent=11 // pred_fallthru
        _
      // Predicated region
      $region49: #{resnet18_forward.1} parent=11 // pred_check
        %p453 = pneg %p259
      $region50: #{resnet18_forward.1} parent=11 // pred_check_branch
        %455 = sbr.rel (%p453) target = $region52
      $region51: #{resnet18_forward.1} parent=11 // pred_region
        _
      $region52: #{resnet18_forward.1} parent=11 // pred_fallthru
        _
      // Predicated region
      $region53: #{resnet18_forward.1} parent=11 // pred_check
        %p456 = pneg %p280
      $region54: #{resnet18_forward.1} parent=11 // pred_check_branch
        %458 = sbr.rel (%p456) target = $region56
      $region55: #{resnet18_forward.1} parent=11 // pred_region
        _
      $region56: #{resnet18_forward.1} parent=11 // pred_fallthru
        _
      // Predicated region
      $region57: #{resnet18_forward.1} parent=11 // pred_check
        %p459 = pneg %p301
      $region58: #{resnet18_forward.1} parent=11 // pred_check_branch
        %461 = sbr.rel (%p459) target = $region60
      $region59: #{resnet18_forward.1} parent=11 // pred_region
        _
      $region60: #{resnet18_forward.1} parent=11 // pred_fallthru
        _
      // Predicated region
      $region61: #{resnet18_forward.1} parent=11 // pred_check
        %p462 = pneg %p322
      $region62: #{resnet18_forward.1} parent=11 // pred_check_branch
        %464 = sbr.rel (%p462) target = $region64
      $region63: #{resnet18_forward.1} parent=11 // pred_region
        _
      $region64: #{resnet18_forward.1} parent=11 // pred_fallthru
        _
      // Predicated region
      $region65: #{resnet18_forward.1} parent=11 // pred_check
        %p465 = pneg %p343
      $region66: #{resnet18_forward.1} parent=11 // pred_check_branch
        %467 = sbr.rel (%p465) target = $region68
      $region67: #{resnet18_forward.1} parent=11 // pred_region
        _
      $region68: #{resnet18_forward.1} parent=11 // pred_fallthru
        _
      // Predicated region
      $region69: #{resnet18_forward.1} parent=11 // pred_check
        %p468 = pneg %p364
      $region70: #{resnet18_forward.1} parent=11 // pred_check_branch
        %470 = sbr.rel (%p468) target = $region72
      $region71: #{resnet18_forward.1} parent=11 // pred_region
        _
      $region72: #{resnet18_forward.1} parent=11 // pred_fallthru
        _
      // Predicated region
      $region73: #{resnet18_forward.1} parent=11 // pred_check
        %p471 = pneg %p385
      $region74: #{resnet18_forward.1} parent=11 // pred_check_branch
        %473 = sbr.rel (%p471) target = $region76
      $region75: #{resnet18_forward.1} parent=11 // pred_region
        _
      $region76: #{resnet18_forward.1} parent=11 // pred_fallthru
        _
    $region12: #{resnet18_forward.1} parent=5 // pred_fallthru
      _
    %p474 = scmp.lt.s32.totalorder %s23, 2
    // Predicated region
    $region77: #{resnet18_forward.1} parent=5 // pred_check
      %p475 = pneg %p474
    $region78: #{resnet18_forward.1} parent=5 // pred_check_branch
      %477 = sbr.rel (%p475) target = $region80
    $region79: #{resnet18_forward.1} parent=5 // pred_region
      // Predicated region
      $region81: #{resnet18_forward.1} parent=79 // pred_check
        %p478 = pneg %p43
      $region82: #{resnet18_forward.1} parent=79 // pred_check_branch
        %480 = sbr.rel (%p478) target = $region84
      $region83: #{resnet18_forward.1} parent=79 // pred_region
        %p481 = scmp.lt.s32.totalorder %s23, 1
        %s482 = scalar_select %p481, %s23, 1
        %s483 = smul.addr %s482, 2
        %s484 = smul.addr %s483, 8
        %s485 = scalar_lea.vmem %s0, %s484
      $region84: #{resnet18_forward.1} parent=79 // pred_fallthru
        _
    $region80: #{resnet18_forward.1} parent=5 // pred_fallthru
      _
    %p486 = scmp.le.s32.totalorder 1, %s23
    %p487 = scmp.lt.s32.totalorder %s23, 3
    %p488 = pnand %p486, %p487
    %p489 = pneg %p488
    // Predicated region
    $region85: #{resnet18_forward.1} parent=5 // pred_check
      _
    $region86: #{resnet18_forward.1} parent=5 // pred_check_branch
      %491 = sbr.rel (%p488) target = $region88
    $region87: #{resnet18_forward.1} parent=5 // pred_region
      %s492 = ssub.s32 %s23, 1
      %p493 = scmp.lt.s32.totalorder %s28, 1
      %s494 = scalar_select %p493, %s28, 1
      %s495 = smul.addr %s494, 2
      %s496 = smul.addr %s495, 8
      %s497 = scalar_lea.vmem %s0, %s496
      %p498 = pneg %p49
      %p499 = pneg %p46
      %p500 = pneg %p70
      %p501 = pneg %p67
      %p502 = pneg %p91
      %p503 = pneg %p88
      %p504 = pneg %p112
      %p505 = pneg %p109
      %p506 = pneg %p133
      %p507 = pneg %p130
      %p508 = pneg %p154
      %p509 = pneg %p151
      %p510 = pneg %p175
      %p511 = pneg %p172
      %p512 = pneg %p196
      %p513 = pneg %p193
      %p514 = pneg %p217
      %p515 = pneg %p214
      %p516 = pneg %p238
      %p517 = pneg %p235
      %p518 = pneg %p259
      %p519 = pneg %p256
      %p520 = pneg %p280
      %p521 = pneg %p277
      %p522 = pneg %p301
      %p523 = pneg %p298
      %p524 = pneg %p322
      %p525 = pneg %p319
      %p526 = pneg %p343
      %p527 = pneg %p340
      %p528 = pneg %p364
      %p529 = pneg %p361
      %p530 = pneg %p385
      %p531 = pneg %p382
      %p532 = pneg %p411
      %p533 = pneg %p408
      %p534 = scmp.lt.s32.totalorder %s28, 1
      %s535 = scalar_select %p534, %s28, 1
      %s536 = smul.addr %s535, 4
      %s537 = smul.addr %s536, 8
      %s538 = scalar_lea.vmem %s17, %s537
      %p539 = scmp.lt.s32.totalorder %s28, 1
      %s540 = scalar_select %p539, %s28, 1
      %s541 = smul.addr %s540, 2
      %s542 = smul.addr %s541, 8
      %s543 = scalar_lea.vmem %s0, %s542
      %p544 = scmp.lt.s32.totalorder %s28, 1
      %s545 = scalar_select %p544, %s28, 1
      %s546 = smul.addr %s545, 4
      %s547 = smul.addr %s546, 8
      %s548 = scalar_lea.vmem %s17, %s547
      %vm549 = vcmask 138240
      %550 = vst.msk [vmem:[#allocation2] sm:$0xff] %vm549, 0.0
      %vm551 = vcmask 277640
      %552 = vst.msk [vmem:[#allocation2 + $0x10] sm:$0xff] %vm551, 0.0
      %vm553 = vcmask 72704
      %554 = vst.msk [vmem:[#allocation3] sm:$0xff] %vm553, 0.0
      %vm555 = vcmask 671304
      %556 = vst.msk [vmem:[#allocation3] sm:$0xff] %vm555, 0.0
      %vm557 = vcmask 39936
      %558 = vst.msk [vmem:[#allocation4] sm:$0xff] %vm557, 0.0
      %559 = vst.msk [vmem:[#allocation4 + $0x8] sm:$0xff] %vm557, 0.0
      %vm560 = vcmask 212136
      %561 = vst.msk [vmem:[#allocation4] sm:$0xff] %vm560, 0.0
      %562 = vst.msk [vmem:[#allocation4 + $0x8] sm:$0xff] %vm560, 0.0
      %v563 = vld [vmem:[%s543] sm:$0xff]
      %v564 = vld [vmem:[%s543 + $0x8] sm:$0xff]
      %567 = vrot.lane.b32.xlu0 %v563, 17
      %v568 = vpop.permute.xlu0 %567
      %569 = vrot.lane.b32.xlu0 %v564, 17
      %v570 = vpop.permute.xlu0 %569
      %v571 = vsel %vm549, %v568, %v570
      %vm575 = vcmask 1047688
      %576 = vst.msk [vmem:[#allocation2] sm:$0xff] %vm575, %v568
      %577 = vst [vmem:[#allocation2 + $0x8] sm:$0xff] %v571
      %578 = vst.msk [vmem:[#allocation2 + $0x10] sm:$0xff] %vm549, %v570
      %v579 = vlaneseq
      %v580 = vand.u32 %v579, 127
      %v581 = vadd.s32 %v580, 128
      %v582 = vand.u32 %v580, 15
      %v583 = vand.u32 %v581, 15
      %vm584 = vcmp.ne.s32.totalorder %v582, 0
      %vm585 = vcmp.ne.s32.totalorder %v583, 0
      %vm586 = vcmp.ne.s32.totalorder %v582, 15
      %vm587 = vcmp.ne.s32.totalorder %v583, 15
      %v588 = vld [vmem:[#allocation2] sm:$0xff]
      %v589 = vld [vmem:[#allocation2 + $0x8] sm:$0xff]
      %v590 = vsel %vm584, 1, 0
      %v591 = vsel %vm585, 1, 0
      %vm592 = vcmp.eq.s32.totalorder %v590, 1
      %vm593 = vcmp.eq.s32.totalorder %v591, 1
      %v594 = vsel %vm592, %v588, 0.0
      %v595 = vsel %vm593, %v589, 0.0
      %v596 = vld [vmem:[#allocation2 + $0x10] sm:$0xff]
      %v597 = vsel %vm586, 1, 0
      %v598 = vsel %vm587, 1, 0
      %vm599 = vcmp.eq.s32.totalorder %v597, 1
      %vm600 = vcmp.eq.s32.totalorder %v598, 1
      %604 = vrot.lane.b32.xlu0 %v588, 126
      %v605 = vpop.permute.xlu0 %604
      %606 = vrot.lane.b32.xlu0 %v589, 126
      %v607 = vpop.permute.xlu0 %606
      %608 = vrot.lane.b32.xlu0 %v596, 126
      %v609 = vpop.permute.xlu0 %608
      %vm610 = vcmask 1031168
      %v611 = vsel %vm610, %v605, %v607
      %v612 = vsel %vm610, %v607, %v609
      %v615 = vsel %vm599, %v611, 0.0
      %v616 = vsel %vm600, %v612, 0.0
      %617 = vrot.lane.b32.xlu0 %v588, 112
      %v618 = vpop.permute.xlu0 %617
      %619 = vrot.lane.b32.xlu0 %v589, 112
      %v620 = vpop.permute.xlu0 %619
      %621 = vrot.lane.b32.xlu0 %v596, 112
      %v622 = vpop.permute.xlu0 %621
      %vm623 = vcmask 916480
      %v624 = vsel %vm623, %v618, %v620
      %v625 = vsel %vm623, %v620, %v622
      %v628 = vsel %vm592, %v624, 0.0
      %v629 = vsel %vm593, %v625, 0.0
      %630 = vrot.lane.b32.xlu0 %v588, 110
      %v631 = vpop.permute.xlu0 %630
      %632 = vrot.lane.b32.xlu0 %v589, 110
      %v633 = vpop.permute.xlu0 %632
      %634 = vrot.lane.b32.xlu0 %v596, 110
      %v635 = vpop.permute.xlu0 %634
      %vm636 = vcmask 900096
      %v637 = vsel %vm636, %v631, %v633
      %v638 = vsel %vm636, %v633, %v635
      %v641 = vsel %vm599, %v637, 0.0
      %v642 = vsel %vm600, %v638, 0.0
      %643 = vrot.lane.b32.xlu0 %v588, 96
      %v644 = vpop.permute.xlu0 %643
      %645 = vrot.lane.b32.xlu0 %v589, 96
      %v646 = vpop.permute.xlu0 %645
      %647 = vrot.lane.b32.xlu0 %v596, 96
      %v648 = vpop.permute.xlu0 %647
      %vm649 = vcmask 785408
      %v650 = vsel %vm649, %v644, %v646
      %v651 = vsel %vm649, %v646, %v648
      %v654 = vsel %vm592, %v650, 0.0
      %v655 = vsel %vm593, %v651, 0.0
      %656 = vrot.lane.b32.xlu0 %v588, 94
      %v657 = vpop.permute.xlu0 %656
      %658 = vrot.lane.b32.xlu0 %v589, 94
      %v659 = vpop.permute.xlu0 %658
      %660 = vrot.lane.b32.xlu0 %v596, 94
      %v661 = vpop.permute.xlu0 %660
      %vm662 = vcmask 769024
      %v663 = vsel %vm662, %v657, %v659
      %v664 = vsel %vm662, %v659, %v661
      %v667 = vsel %vm599, %v663, 0.0
      %v668 = vsel %vm600, %v664, 0.0
      %669 = vrot.lane.b32.xlu0 %v588, 127
      %v670 = vpop.permute.xlu0 %669
      %671 = vrot.lane.b32.xlu0 %v589, 127
      %v672 = vpop.permute.xlu0 %671
      %673 = vrot.lane.b32.xlu0 %v596, 127
      %v674 = vpop.permute.xlu0 %673
      %vm675 = vcmask 1039360
      %v676 = vsel %vm675, %v670, %v672
      %v677 = vsel %vm675, %v672, %v674
      %680 = vrot.lane.b32.xlu0 %v588, 111
      %v681 = vpop.permute.xlu0 %680
      %682 = vrot.lane.b32.xlu0 %v589, 111
      %v683 = vpop.permute.xlu0 %682
      %684 = vrot.lane.b32.xlu0 %v596, 111
      %v685 = vpop.permute.xlu0 %684
      %vm686 = vcmask 908288
      %v687 = vsel %vm686, %v681, %v683
      %v688 = vsel %vm686, %v683, %v685
      %691 = vrot.lane.b32.xlu0 %v588, 95
      %v692 = vpop.permute.xlu0 %691
      %693 = vrot.lane.b32.xlu0 %v589, 95
      %v694 = vpop.permute.xlu0 %693
      %695 = vrot.lane.b32.xlu0 %v596, 95
      %v696 = vpop.permute.xlu0 %695
      %vm697 = vcmask 777216
      %v698 = vsel %vm697, %v692, %v694
      %v699 = vsel %vm697, %v694, %v696
      %v702 = vld [vmem:[%s1] sm:$0xff]
      %v703 = vld [vmem:[%s2] sm:$0xff]
      %705 = vset.pattern.permute.xlu0 0
      %706 = vperm.xlu0 %705, %v703
      %v707 = vpop.permute.xlu0 %706
      %vm709 = vcmask 588800
      %v711 = vsel %vm709, %v702, 0
      %713 = vmatpush.msra.mxu0 0.0
      %714 = vmatpush.msra.mxu0 0.0
      %715 = vmatpush.msra.mxu0 0.0
      %716 = vmatpush.msra.mxu0 0.0
      %717 = vmatpush.msra.mxu0 0.0
      %718 = vmatpush.msra.mxu0 0.0
      %719 = vmatpush.msra.mxu0 0.0
      %720 = vmatpush.msra.mxu0 %v667
      %721 = vmatpush.msra.mxu0 %v698
      %722 = vmatpush.msra.mxu0 %v654
      %723 = vmatpush.msra.mxu0 %v641
      %724 = vmatpush.msra.mxu0 %v687
      %725 = vmatpush.msra.mxu0 %v628
      %726 = vmatpush.msra.mxu0 %v615
      %727 = vmatpush.msra.mxu0 %v676
      %728 = vmatpush.msra.mxu0 %v594
      %729 = vmatmul.f32.gmra.mxu0 %v711
      %v730 = vpop.f32.mrf.mxu0
      %v731 = vadd.f32 %v707, %v730
      %732 = vdwg.mxu0
      %733 = vmatpush.msra.mxu0 0.0
      %734 = vmatpush.msra.mxu0 0.0
      %735 = vmatpush.msra.mxu0 0.0
      %736 = vmatpush.msra.mxu0 0.0
      %737 = vmatpush.msra.mxu0 0.0
      %738 = vmatpush.msra.mxu0 0.0
      %739 = vmatpush.msra.mxu0 0.0
      %740 = vmatpush.msra.mxu0 %v668
      %741 = vmatpush.msra.mxu0 %v699
      %742 = vmatpush.msra.mxu0 %v655
      %743 = vmatpush.msra.mxu0 %v642
      %744 = vmatpush.msra.mxu0 %v688
      %745 = vmatpush.msra.mxu0 %v629
      %746 = vmatpush.msra.mxu0 %v616
      %747 = vmatpush.msra.mxu0 %v677
      %748 = vmatpush.msra.mxu0 %v595
      %749 = vmatmul.f32.gmra.mxu0 %v711
      %v750 = vpop.f32.mrf.mxu0
      %v751 = vadd.f32 %v707, %v750
      %752 = vdwg.mxu0
      %v753 = vmax.f32 %v731, 0.0
      %v754 = vmax.f32 %v751, 0.0
      %757 = vrot.lane.b32.xlu0 %v753, 17
      %v758 = vpop.permute.xlu0 %757
      %759 = vrot.lane.b32.xlu0 %v754, 17
      %v760 = vpop.permute.xlu0 %759
      %v761 = vsel %vm549, %v758, %v760
      %765 = vst.msk [vmem:[#allocation2] sm:$0xff] %vm575, %v758
      %766 = vst [vmem:[#allocation2 + $0x8] sm:$0xff] %v761
      %767 = vst.msk [vmem:[#allocation2 + $0x10] sm:$0xff] %vm549, %v760
      %v768 = vld [vmem:[#allocation2] sm:$0xff]
      %v769 = vld [vmem:[#allocation2 + $0x8] sm:$0xff]
      %v770 = vld [vmem:[#allocation2 + $0x10] sm:$0xff]
      %774 = vrot.lane.b32.xlu0 %v768, 127
      %v775 = vpop.permute.xlu0 %774
      %776 = vrot.lane.b32.xlu0 %v769, 127
      %v777 = vpop.permute.xlu0 %776
      %778 = vrot.lane.b32.xlu0 %v770, 127
      %v779 = vpop.permute.xlu0 %778
      %v780 = vsel %vm675, %v775, %v777
      %v781 = vsel %vm675, %v777, %v779
      %v785 = vmax.f32 %v768, %v780
      %v786 = vmax.f32 %v769, %v781
      %v787 = vmax.f32 %v770, %v779
      %791 = vrot.lane.b32.xlu0 %v785, 112
      %v792 = vpop.permute.xlu0 %791
      %793 = vrot.lane.b32.xlu0 %v786, 112
      %v794 = vpop.permute.xlu0 %793
      %795 = vrot.lane.b32.xlu0 %v787, 112
      %v796 = vpop.permute.xlu0 %795
      %v797 = vsel %vm623, %v792, %v794
      %v798 = vsel %vm623, %v794, %v796
      %v802 = vmax.f32 %v785, %v797
      %v803 = vmax.f32 %v786, %v798
      %v804 = vmax.f32 %v787, %v796
      %v805 = vld [vmem:[%s15] sm:$0xff]
      %v806 = vld [vmem:[%s15 + $0x8] sm:$0xff]
      %v807 = vld [vmem:[%s15 + $0x10] sm:$0xff]
      %v808 = vld [vmem:[%s15 + $0x18] sm:$0xff]
      %v809 = vld [vmem:[%s15 + $0x20] sm:$0xff]
      %v810 = vld [vmem:[%s15 + $0x28] sm:$0xff]
      %v811 = vld [vmem:[%s15 + $0x30] sm:$0xff]
      %v812 = vld [vmem:[%s15 + $0x38] sm:$0xff]
      %v813 = vld [vmem:[%s15 + $0x40] sm:$0xff]
      %v814 = vld [vmem:[%s15 + $0x48] sm:$0xff]
      %v815 = vld [vmem:[%s15 + $0x50] sm:$0xff]
      %v816 = vld [vmem:[%s15 + $0x58] sm:$0xff]
      %v817 = vld [vmem:[%s15 + $0x60] sm:$0xff]
      %v818 = vld [vmem:[%s15 + $0x68] sm:$0xff]
      %v819 = vld [vmem:[%s15 + $0x70] sm:$0xff]
      %v820 = vld [vmem:[%s15 + $0x78] sm:$0xff]
      %v821 = vld [vmem:[%s15 + $0x80] sm:$0xff]
      %v822 = vld [vmem:[%s15 + $0x88] sm:$0xff]
      %v823 = vld [vmem:[%s15 + $0x90] sm:$0xff]
      %v824 = vld [vmem:[%s15 + $0x98] sm:$0xff]
      %v825 = vld [vmem:[%s15 + $0xa0] sm:$0xff]
      %v826 = vld [vmem:[%s15 + $0xa8] sm:$0xff]
      %v827 = vld [vmem:[%s15 + $0xb0] sm:$0xff]
      %v828 = vld [vmem:[%s15 + $0xb8] sm:$0xff]
      %v829 = vld [vmem:[%s15 + $0xc0] sm:$0xff]
      %v830 = vld [vmem:[%s15 + $0xc8] sm:$0xff]
      %v831 = vld [vmem:[%s15 + $0xd0] sm:$0xff]
      %v832 = vld [vmem:[%s15 + $0xd8] sm:$0xff]
      %v833 = vld [vmem:[%s15 + $0xe0] sm:$0xff]
      %v834 = vld [vmem:[%s15 + $0xe8] sm:$0xff]
      %v835 = vld [vmem:[%s15 + $0xf0] sm:$0xff]
      %v836 = vld [vmem:[%s15 + $0xf8] sm:$0xff]
      %840 = vrot.lane.b32.xlu0 %v802, 111
      %v841 = vpop.permute.xlu0 %840
      %842 = vrot.lane.b32.xlu0 %v803, 111
      %v843 = vpop.permute.xlu0 %842
      %844 = vrot.lane.b32.xlu0 %v804, 111
      %v845 = vpop.permute.xlu0 %844
      %v846 = vsel %vm686, %v841, %v843
      %v847 = vsel %vm686, %v843, %v845
      %850 = vmatpush.msra.mxu0 %v820
      %851 = vmatpush.msra.mxu0 %v819
      %852 = vmatpush.msra.mxu0 %v818
      %853 = vmatpush.msra.mxu0 %v817
      %854 = vmatpush.msra.mxu0 %v816
      %855 = vmatpush.msra.mxu0 %v815
      %856 = vmatpush.msra.mxu0 %v814
      %857 = vmatpush.msra.mxu0 %v813
      %858 = vmatpush.msra.mxu0 %v812
      %859 = vmatpush.msra.mxu0 %v811
      %860 = vmatpush.msra.mxu0 %v810
      %861 = vmatpush.msra.mxu0 %v809
      %862 = vmatpush.msra.mxu0 %v808
      %863 = vmatpush.msra.mxu0 %v807
      %864 = vmatpush.msra.mxu0 %v806
      %865 = vmatpush.msra.mxu0 %v805
      %866 = vmatmul.f32.gmra.mxu0 %v846
      %v867 = vpop.f32.mrf.mxu0
      %v868 = vadd.f32 0.0, %v867
      %869 = vdwg.mxu0
      %870 = vmatpush.msra.mxu0 %v836
      %871 = vmatpush.msra.mxu0 %v835
      %872 = vmatpush.msra.mxu0 %v834
      %873 = vmatpush.msra.mxu0 %v833
      %874 = vmatpush.msra.mxu0 %v832
      %875 = vmatpush.msra.mxu0 %v831
      %876 = vmatpush.msra.mxu0 %v830
      %877 = vmatpush.msra.mxu0 %v829
      %878 = vmatpush.msra.mxu0 %v828
      %879 = vmatpush.msra.mxu0 %v827
      %880 = vmatpush.msra.mxu0 %v826
      %881 = vmatpush.msra.mxu0 %v825
      %882 = vmatpush.msra.mxu0 %v824
      %883 = vmatpush.msra.mxu0 %v823
      %884 = vmatpush.msra.mxu0 %v822
      %885 = vmatpush.msra.mxu0 %v821
      %886 = vmatmul.f32.gmra.mxu0 %v847
      %v887 = vpop.f32.mrf.mxu0
      %v888 = vadd.f32 %v868, %v887
      %889 = vdwg.mxu0
      %891 = vrot.lane.b32.xlu0 %v888, 9
      %v892 = vpop.permute.xlu0 %891
      %vm894 = vcmask 597064
      %895 = vst.msk [vmem:[#allocation3] sm:$0xff] %vm894, %v892
      %v896 = vand.u32 %v580, 7
      %vm897 = vcmp.ne.s32.totalorder %v896, 0
      %vm898 = vcmp.ne.s32.totalorder %v896, 7
      %v899 = vld [vmem:[#allocation3] sm:$0xff]
      %v900 = vsel %vm897, 1, 0
      %vm901 = vcmp.eq.s32.totalorder %v900, 1
      %v902 = vsel %vm901, %v899, 0.0
      %v903 = vsel %vm898, 1, 0
      %vm904 = vcmp.eq.s32.totalorder %v903, 1
      %906 = vrot.lane.b32.xlu0 %v899, 126
      %v907 = vpop.permute.xlu0 %906
      %v909 = vsel %vm904, %v907, 0.0
      %910 = vrot.lane.b32.xlu0 %v899, 120
      %v911 = vpop.permute.xlu0 %910
      %v913 = vsel %vm901, %v911, 0.0
      %914 = vrot.lane.b32.xlu0 %v899, 118
      %v915 = vpop.permute.xlu0 %914
      %v917 = vsel %vm904, %v915, 0.0
      %918 = vrot.lane.b32.xlu0 %v899, 112
      %v919 = vpop.permute.xlu0 %918
      %v921 = vsel %vm901, %v919, 0.0
      %922 = vrot.lane.b32.xlu0 %v899, 110
      %v923 = vpop.permute.xlu0 %922
      %v925 = vsel %vm904, %v923, 0.0
      %926 = vrot.lane.b32.xlu0 %v899, 127
      %v927 = vpop.permute.xlu0 %926
      %929 = vrot.lane.b32.xlu0 %v899, 119
      %v930 = vpop.permute.xlu0 %929
      %932 = vrot.lane.b32.xlu0 %v899, 111
      %v933 = vpop.permute.xlu0 %932
      %v935 = vld [vmem:[%s3] sm:$0xff]
      %v936 = vld [vmem:[%s4] sm:$0xff]
      %938 = vset.pattern.permute.xlu0 0
      %939 = vperm.xlu0 %938, %v936
      %v940 = vpop.permute.xlu0 %939
      %v943 = vsel %vm709, %v935, 0
      %945 = vmatpush.msra.mxu0 0.0
      %946 = vmatpush.msra.mxu0 0.0
      %947 = vmatpush.msra.mxu0 0.0
      %948 = vmatpush.msra.mxu0 0.0
      %949 = vmatpush.msra.mxu0 0.0
      %950 = vmatpush.msra.mxu0 0.0
      %951 = vmatpush.msra.mxu0 0.0
      %952 = vmatpush.msra.mxu0 %v925
      %953 = vmatpush.msra.mxu0 %v933
      %954 = vmatpush.msra.mxu0 %v921
      %955 = vmatpush.msra.mxu0 %v917
      %956 = vmatpush.msra.mxu0 %v930
      %957 = vmatpush.msra.mxu0 %v913
      %958 = vmatpush.msra.mxu0 %v909
      %959 = vmatpush.msra.mxu0 %v927
      %960 = vmatpush.msra.mxu0 %v902
      %961 = vmatmul.f32.gmra.mxu0 %v943
      %v962 = vpop.f32.mrf.mxu0
      %v963 = vadd.f32 %v940, %v962
      %964 = vdwg.mxu0
      %v965 = vmax.f32 %v963, 0.0
      %967 = vrot.lane.b32.xlu0 %v965, 9
      %v968 = vpop.permute.xlu0 %967
      %970 = vst.msk [vmem:[#allocation3] sm:$0xff] %vm894, %v968
      %v971 = vld [vmem:[#allocation3] sm:$0xff]
      %v972 = vsel %vm901, %v971, 0.0
      %974 = vrot.lane.b32.xlu0 %v971, 126
      %v975 = vpop.permute.xlu0 %974
      %v977 = vsel %vm904, %v975, 0.0
      %978 = vrot.lane.b32.xlu0 %v971, 120
      %v979 = vpop.permute.xlu0 %978
      %v981 = vsel %vm901, %v979, 0.0
      %982 = vrot.lane.b32.xlu0 %v971, 118
      %v983 = vpop.permute.xlu0 %982
      %v985 = vsel %vm904, %v983, 0.0
      %986 = vrot.lane.b32.xlu0 %v971, 112
      %v987 = vpop.permute.xlu0 %986
      %v989 = vsel %vm901, %v987, 0.0
      %990 = vrot.lane.b32.xlu0 %v971, 110
      %v991 = vpop.permute.xlu0 %990
      %v993 = vsel %vm904, %v991, 0.0
      %994 = vrot.lane.b32.xlu0 %v971, 127
      %v995 = vpop.permute.xlu0 %994
      %997 = vrot.lane.b32.xlu0 %v971, 119
      %v998 = vpop.permute.xlu0 %997
      %1000 = vrot.lane.b32.xlu0 %v971, 111
      %v1001 = vpop.permute.xlu0 %1000
      %v1003 = vld [vmem:[%s5] sm:$0xff]
      %v1004 = vld [vmem:[%s6] sm:$0xff]
      %1006 = vset.pattern.permute.xlu0 0
      %1007 = vperm.xlu0 %1006, %v1004
      %v1008 = vpop.permute.xlu0 %1007
      %v1011 = vsel %vm709, %v1003, 0
      %1013 = vmatpush.msra.mxu0 0.0
      %1014 = vmatpush.msra.mxu0 0.0
      %1015 = vmatpush.msra.mxu0 0.0
      %1016 = vmatpush.msra.mxu0 0.0
      %1017 = vmatpush.msra.mxu0 0.0
      %1018 = vmatpush.msra.mxu0 0.0
      %1019 = vmatpush.msra.mxu0 0.0
      %1020 = vmatpush.msra.mxu0 %v993
      %1021 = vmatpush.msra.mxu0 %v1001
      %1022 = vmatpush.msra.mxu0 %v989
      %1023 = vmatpush.msra.mxu0 %v985
      %1024 = vmatpush.msra.mxu0 %v998
      %1025 = vmatpush.msra.mxu0 %v981
      %1026 = vmatpush.msra.mxu0 %v977
      %1027 = vmatpush.msra.mxu0 %v995
      %1028 = vmatpush.msra.mxu0 %v972
      %1029 = vmatmul.f32.gmra.mxu0 %v1011
      %v1030 = vpop.f32.mrf.mxu0
      %v1031 = vadd.f32 %v1008, %v1030
      %1032 = vdwg.mxu0
      %v1033 = vadd.f32 %v1031, %v888
      %v1034 = vmax.f32 %v1033, 0.0
      %v1035 = vld [vmem:[%s16] sm:$0xff]
      %v1036 = vld [vmem:[%s16 + $0x8] sm:$0xff]
      %v1037 = vld [vmem:[%s16 + $0x10] sm:$0xff]
      %v1038 = vld [vmem:[%s16 + $0x18] sm:$0xff]
      %v1039 = vld [vmem:[%s16 + $0x20] sm:$0xff]
      %v1040 = vld [vmem:[%s16 + $0x28] sm:$0xff]
      %v1041 = vld [vmem:[%s16 + $0x30] sm:$0xff]
      %v1042 = vld [vmem:[%s16 + $0x38] sm:$0xff]
      %1044 = vrot.lane.b32.xlu0 %v1034, 9
      %v1045 = vpop.permute.xlu0 %1044
      %1047 = vst.msk [vmem:[#allocation3] sm:$0xff] %vm894, %v1045
      %v1048 = vld [vmem:[#allocation3] sm:$0xff]
      %v1049 = vsel %vm901, %v1048, 0.0
      %1051 = vrot.lane.b32.xlu0 %v1048, 126
      %v1052 = vpop.permute.xlu0 %1051
      %v1054 = vsel %vm904, %v1052, 0.0
      %1055 = vrot.lane.b32.xlu0 %v1048, 120
      %v1056 = vpop.permute.xlu0 %1055
      %v1058 = vsel %vm901, %v1056, 0.0
      %1059 = vrot.lane.b32.xlu0 %v1048, 118
      %v1060 = vpop.permute.xlu0 %1059
      %v1062 = vsel %vm904, %v1060, 0.0
      %1063 = vrot.lane.b32.xlu0 %v1048, 112
      %v1064 = vpop.permute.xlu0 %1063
      %v1066 = vsel %vm901, %v1064, 0.0
      %1067 = vrot.lane.b32.xlu0 %v1048, 110
      %v1068 = vpop.permute.xlu0 %1067
      %v1070 = vsel %vm904, %v1068, 0.0
      %1071 = vrot.lane.b32.xlu0 %v1048, 127
      %v1072 = vpop.permute.xlu0 %1071
      %1074 = vrot.lane.b32.xlu0 %v1048, 119
      %v1075 = vpop.permute.xlu0 %1074
      %1077 = vrot.lane.b32.xlu0 %v1048, 111
      %v1078 = vpop.permute.xlu0 %1077
      %v1080 = vld [vmem:[%s7] sm:$0xff]
      %v1081 = vld [vmem:[%s7 + $0x8] sm:$0xff]
      %v1082 = vld [vmem:[%s8] sm:$0xff]
      %v1083 = vld [vmem:[%s8 + $0x8] sm:$0xff]
      %1085 = vset.pattern.permute.xlu0 0
      %1086 = vperm.xlu0 %1085, %v1082
      %v1087 = vpop.permute.xlu0 %1086
      %1090 = vset.pattern.permute.xlu0 0
      %1091 = vperm.xlu0 %1090, %v1083
      %v1092 = vpop.permute.xlu0 %1091
      %v1095 = vsel %vm709, %v1080, 0
      %v1098 = vsel %vm709, %v1081, 0
      %1100 = vmatpush.msra.mxu0 0.0
      %1101 = vmatpush.msra.mxu0 0.0
      %1102 = vmatpush.msra.mxu0 0.0
      %1103 = vmatpush.msra.mxu0 0.0
      %1104 = vmatpush.msra.mxu0 0.0
      %1105 = vmatpush.msra.mxu0 0.0
      %1106 = vmatpush.msra.mxu0 0.0
      %1107 = vmatpush.msra.mxu0 %v1070
      %1108 = vmatpush.msra.mxu0 %v1078
      %1109 = vmatpush.msra.mxu0 %v1066
      %1110 = vmatpush.msra.mxu0 %v1062
      %1111 = vmatpush.msra.mxu0 %v1075
      %1112 = vmatpush.msra.mxu0 %v1058
      %1113 = vmatpush.msra.mxu0 %v1054
      %1114 = vmatpush.msra.mxu0 %v1072
      %1115 = vmatpush.msra.mxu0 %v1049
      %1116 = vmatmul.f32.gmra.mxu0 %v1095
      %v1117 = vpop.f32.mrf.mxu0
      %v1118 = vadd.f32 %v1087, %v1117
      %1119 = vmatmul.f32.gmra.mxu0 %v1098
      %v1120 = vpop.f32.mrf.mxu0
      %v1121 = vadd.f32 %v1092, %v1120
      %1122 = vdwg.mxu0
      %v1123 = vmax.f32 %v1118, 0.0
      %v1124 = vmax.f32 %v1121, 0.0
      %vm1125 = vcmask 523264
      %v1127 = vsel %vm1125, %v1123, 0
      %v1130 = vsel %vm1125, %v1124, 0
      %1132 = vmatpush.msra.mxu0 0.0
      %1133 = vmatpush.msra.mxu0 0.0
      %1134 = vmatpush.msra.mxu0 0.0
      %1135 = vmatpush.msra.mxu0 0.0
      %1136 = vmatpush.msra.mxu0 0.0
      %1137 = vmatpush.msra.mxu0 0.0
      %1138 = vmatpush.msra.mxu0 0.0
      %1139 = vmatpush.msra.mxu0 0.0
      %1140 = vmatpush.msra.mxu0 %v1042
      %1141 = vmatpush.msra.mxu0 %v1041
      %1142 = vmatpush.msra.mxu0 %v1040
      %1143 = vmatpush.msra.mxu0 %v1039
      %1144 = vmatpush.msra.mxu0 %v1038
      %1145 = vmatpush.msra.mxu0 %v1037
      %1146 = vmatpush.msra.mxu0 %v1036
      %1147 = vmatpush.msra.mxu0 %v1035
      %1148 = vmatmul.f32.gmra.mxu0 %v1127
      %v1149 = vpop.f32.mrf.mxu0
      %v1150 = vadd.f32 0.0, %v1149
      %1151 = vmatmul.f32.gmra.mxu0 %v1130
      %v1152 = vpop.f32.mrf.mxu0
      %v1153 = vadd.f32 0.0, %v1152
      %1154 = vdwg.mxu0
      %v1155 = vsel %vm1125, %v1034, 0
      %1157 = vmatpush.msra.mxu0 0.0
      %1158 = vmatpush.msra.mxu0 0.0
      %1159 = vmatpush.msra.mxu0 0.0
      %1160 = vmatpush.msra.mxu0 0.0
      %1161 = vmatpush.msra.mxu0 0.0
      %1162 = vmatpush.msra.mxu0 0.0
      %1163 = vmatpush.msra.mxu0 0.0
      %1164 = vmatpush.msra.mxu0 0.0
      %1165 = vmatpush.msra.mxu0 %v1042
      %1166 = vmatpush.msra.mxu0 %v1041
      %1167 = vmatpush.msra.mxu0 %v1040
      %1168 = vmatpush.msra.mxu0 %v1039
      %1169 = vmatpush.msra.mxu0 %v1038
      %1170 = vmatpush.msra.mxu0 %v1037
      %1171 = vmatpush.msra.mxu0 %v1036
      %1172 = vmatpush.msra.mxu0 %v1035
      %1173 = vmatmul.f32.gmra.mxu0 %v1155
      %v1174 = vpop.f32.mrf.mxu0
      %v1175 = vadd.f32 0.0, %v1174
      %1176 = vdwg.mxu0
      %v1177 = vld [vmem:[%s11] sm:$0xff]
      %v1178 = vld [vmem:[%s11 + $0x8] sm:$0xff]
      %v1179 = vld [vmem:[%s12] sm:$0xff]
      %v1180 = vld [vmem:[%s12 + $0x8] sm:$0xff]
      %1182 = vset.pattern.permute.xlu0 0
      %1183 = vperm.xlu0 %1182, %v1179
      %v1184 = vpop.permute.xlu0 %1183
      %1187 = vset.pattern.permute.xlu0 0
      %1188 = vperm.xlu0 %1187, %v1180
      %v1189 = vpop.permute.xlu0 %1188
      %vm1191 = vcmask 64512
      %v1193 = vsel %vm1191, %v1177, 0
      %v1196 = vsel %vm1191, %v1178, 0
      %1198 = vmatpush.msra.mxu0 0.0
      %1199 = vmatpush.msra.mxu0 0.0
      %1200 = vmatpush.msra.mxu0 0.0
      %1201 = vmatpush.msra.mxu0 0.0
      %1202 = vmatpush.msra.mxu0 0.0
      %1203 = vmatpush.msra.mxu0 0.0
      %1204 = vmatpush.msra.mxu0 0.0
      %1205 = vmatpush.msra.mxu0 0.0
      %1206 = vmatpush.msra.mxu0 0.0
      %1207 = vmatpush.msra.mxu0 0.0
      %1208 = vmatpush.msra.mxu0 0.0
      %1209 = vmatpush.msra.mxu0 0.0
      %1210 = vmatpush.msra.mxu0 0.0
      %1211 = vmatpush.msra.mxu0 0.0
      %1212 = vmatpush.msra.mxu0 0.0
      %1213 = vmatpush.msra.mxu0 %v1175
      %1214 = vmatmul.f32.gmra.mxu0 %v1193
      %v1215 = vpop.f32.mrf.mxu0
      %v1216 = vadd.f32 %v1184, %v1215
      %1217 = vmatmul.f32.gmra.mxu0 %v1196
      %v1218 = vpop.f32.mrf.mxu0
      %v1219 = vadd.f32 %v1189, %v1218
      %1220 = vdwg.mxu0
      %1223 = vrot.lane.b32.xlu0 %v1150, 5
      %v1224 = vpop.permute.xlu0 %1223
      %1225 = vrot.lane.b32.xlu0 %v1153, 5
      %v1226 = vpop.permute.xlu0 %1225
      %vm1229 = vcmask 171048
      %1230 = vst.msk [vmem:[#allocation4] sm:$0xff] %vm1229, %v1224
      %1231 = vst.msk [vmem:[#allocation4 + $0x8] sm:$0xff] %vm1229, %v1226
      %v1232 = vand.u32 %v580, 3
      %vm1233 = vcmp.ne.s32.totalorder %v1232, 0
      %vm1234 = vcmp.ne.s32.totalorder %v1232, 3
      %v1235 = vld [vmem:[#allocation4] sm:$0xff]
      %v1236 = vld [vmem:[#allocation4 + $0x8] sm:$0xff]
      %v1237 = vsel %vm1233, 1, 0
      %vm1238 = vcmp.eq.s32.totalorder %v1237, 1
      %v1239 = vsel %vm1238, %v1235, 0.0
      %v1240 = vsel %vm1238, %v1236, 0.0
      %v1241 = vsel %vm1234, 1, 0
      %vm1242 = vcmp.eq.s32.totalorder %v1241, 1
      %1245 = vrot.lane.b32.xlu0 %v1235, 126
      %v1246 = vpop.permute.xlu0 %1245
      %1247 = vrot.lane.b32.xlu0 %v1236, 126
      %v1248 = vpop.permute.xlu0 %1247
      %v1251 = vsel %vm1242, %v1246, 0.0
      %v1252 = vsel %vm1242, %v1248, 0.0
      %1253 = vrot.lane.b32.xlu0 %v1235, 124
      %v1254 = vpop.permute.xlu0 %1253
      %1255 = vrot.lane.b32.xlu0 %v1236, 124
      %v1256 = vpop.permute.xlu0 %1255
      %v1259 = vsel %vm1238, %v1254, 0.0
      %v1260 = vsel %vm1238, %v1256, 0.0
      %1261 = vrot.lane.b32.xlu0 %v1235, 122
      %v1262 = vpop.permute.xlu0 %1261
      %1263 = vrot.lane.b32.xlu0 %v1236, 122
      %v1264 = vpop.permute.xlu0 %1263
      %v1267 = vsel %vm1242, %v1262, 0.0
      %v1268 = vsel %vm1242, %v1264, 0.0
      %1269 = vrot.lane.b32.xlu0 %v1235, 120
      %v1270 = vpop.permute.xlu0 %1269
      %1271 = vrot.lane.b32.xlu0 %v1236, 120
      %v1272 = vpop.permute.xlu0 %1271
      %v1275 = vsel %vm1238, %v1270, 0.0
      %v1276 = vsel %vm1238, %v1272, 0.0
      %1277 = vrot.lane.b32.xlu0 %v1235, 118
      %v1278 = vpop.permute.xlu0 %1277
      %1279 = vrot.lane.b32.xlu0 %v1236, 118
      %v1280 = vpop.permute.xlu0 %1279
      %v1283 = vsel %vm1242, %v1278, 0.0
      %v1284 = vsel %vm1242, %v1280, 0.0
      %1285 = vrot.lane.b32.xlu0 %v1235, 127
      %v1286 = vpop.permute.xlu0 %1285
      %1287 = vrot.lane.b32.xlu0 %v1236, 127
      %v1288 = vpop.permute.xlu0 %1287
      %1291 = vrot.lane.b32.xlu0 %v1235, 123
      %v1292 = vpop.permute.xlu0 %1291
      %1293 = vrot.lane.b32.xlu0 %v1236, 123
      %v1294 = vpop.permute.xlu0 %1293
      %1297 = vrot.lane.b32.xlu0 %v1235, 119
      %v1298 = vpop.permute.xlu0 %1297
      %1299 = vrot.lane.b32.xlu0 %v1236, 119
      %v1300 = vpop.permute.xlu0 %1299
      %v1303 = vld [vmem:[%s9] sm:$0xff]
      %v1304 = vld [vmem:[%s9 + $0x8] sm:$0xff]
      %v1305 = vld [vmem:[%s9 + $0x10] sm:$0xff]
      %v1306 = vld [vmem:[%s9 + $0x18] sm:$0xff]
      %v1307 = vld [vmem:[%s10] sm:$0xff]
      %v1308 = vld [vmem:[%s10 + $0x8] sm:$0xff]
      %1310 = vset.pattern.permute.xlu0 0
      %1311 = vperm.xlu0 %1310, %v1307
      %v1312 = vpop.permute.xlu0 %1311
      %1315 = vset.pattern.permute.xlu0 0
      %1316 = vperm.xlu0 %1315, %v1308
      %v1317 = vpop.permute.xlu0 %1316
      %vm1319 = vcmask 130048
      %v1321 = vsel %vm1319, %v1304, 0
      %v1324 = vsel %vm1319, %v1306, 0
      %1326 = vmatpush.msra.mxu0 %v1300
      %1327 = vmatpush.msra.mxu0 %v1298
      %1328 = vmatpush.msra.mxu0 %v1276
      %1329 = vmatpush.msra.mxu0 %v1275
      %1330 = vmatpush.msra.mxu0 %v1268
      %1331 = vmatpush.msra.mxu0 %v1267
      %1332 = vmatpush.msra.mxu0 %v1294
      %1333 = vmatpush.msra.mxu0 %v1292
      %1334 = vmatpush.msra.mxu0 %v1260
      %1335 = vmatpush.msra.mxu0 %v1259
      %1336 = vmatpush.msra.mxu0 %v1252
      %1337 = vmatpush.msra.mxu0 %v1251
      %1338 = vmatpush.msra.mxu0 %v1288
      %1339 = vmatpush.msra.mxu0 %v1286
      %1340 = vmatpush.msra.mxu0 %v1240
      %1341 = vmatpush.msra.mxu0 %v1239
      %1342 = vmatmul.f32.gmra.mxu0 %v1303
      %v1343 = vpop.f32.mrf.mxu0
      %v1344 = vadd.f32 %v1312, %v1343
      %1345 = vmatmul.f32.gmra.mxu0 %v1305
      %v1346 = vpop.f32.mrf.mxu0
      %v1347 = vadd.f32 %v1317, %v1346
      %1348 = vdwg.mxu0
      %1349 = vmatpush.msra.mxu0 0.0
      %1350 = vmatpush.msra.mxu0 0.0
      %1351 = vmatpush.msra.mxu0 0.0
      %1352 = vmatpush.msra.mxu0 0.0
      %1353 = vmatpush.msra.mxu0 0.0
      %1354 = vmatpush.msra.mxu0 0.0
      %1355 = vmatpush.msra.mxu0 0.0
      %1356 = vmatpush.msra.mxu0 0.0
      %1357 = vmatpush.msra.mxu0 0.0
      %1358 = vmatpush.msra.mxu0 0.0
      %1359 = vmatpush.msra.mxu0 0.0
      %1360 = vmatpush.msra.mxu0 0.0
      %1361 = vmatpush.msra.mxu0 0.0
      %1362 = vmatpush.msra.mxu0 0.0
      %1363 = vmatpush.msra.mxu0 %v1284
      %1364 = vmatpush.msra.mxu0 %v1283
      %1365 = vmatmul.f32.gmra.mxu0 %v1321
      %v1366 = vpop.f32.mrf.mxu0
      %v1367 = vadd.f32 %v1344, %v1366
      %1368 = vmatmul.f32.gmra.mxu0 %v1324
      %v1369 = vpop.f32.mrf.mxu0
      %v1370 = vadd.f32 %v1347, %v1369
      %1371 = vdwg.mxu0
      %v1372 = vadd.f32 %v1367, %v1216
      %v1373 = vadd.f32 %v1370, %v1219
      %v1374 = vmax.f32 %v1372, 0.0
      %v1375 = vmax.f32 %v1373, 0.0
      %v1376 = vld [vmem:[%s13] sm:$0xff]
      %v1377 = vld [vmem:[%s13 + $0x8] sm:$0xff]
      %v1378 = vld [vmem:[%s13 + $0x10] sm:$0xff]
      %v1379 = vld [vmem:[%s13 + $0x18] sm:$0xff]
      %v1380 = vld [vmem:[%s14] sm:$0xff]
      %v1381 = vld [vmem:[%s14 + $0x8] sm:$0xff]
      %v1382 = vld [vmem:[%s14 + $0x10] sm:$0xff]
      %v1383 = vld [vmem:[%s14 + $0x18] sm:$0xff]
      %1385 = vset.pattern.permute.xlu0 0
      %1386 = vperm.xlu0 %1385, %v1380
      %v1387 = vpop.permute.xlu0 %1386
      %1390 = vset.pattern.permute.xlu0 0
      %1391 = vperm.xlu0 %1390, %v1381
      %v1392 = vpop.permute.xlu0 %1391
      %1395 = vset.pattern.permute.xlu0 0
      %1396 = vperm.xlu0 %1395, %v1382
      %v1397 = vpop.permute.xlu0 %1396
      %1400 = vset.pattern.permute.xlu0 0
      %1401 = vperm.xlu0 %1400, %v1383
      %v1402 = vpop.permute.xlu0 %1401
      %v1405 = vsel %vm1319, %v1376, 0
      %v1408 = vsel %vm1319, %v1377, 0
      %v1411 = vsel %vm1319, %v1378, 0
      %v1414 = vsel %vm1319, %v1379, 0
      %1416 = vmatpush.msra.mxu0 0.0
      %1417 = vmatpush.msra.mxu0 0.0
      %1418 = vmatpush.msra.mxu0 0.0
      %1419 = vmatpush.msra.mxu0 0.0
      %1420 = vmatpush.msra.mxu0 0.0
      %1421 = vmatpush.msra.mxu0 0.0
      %1422 = vmatpush.msra.mxu0 0.0
      %1423 = vmatpush.msra.mxu0 0.0
      %1424 = vmatpush.msra.mxu0 0.0
      %1425 = vmatpush.msra.mxu0 0.0
      %1426 = vmatpush.msra.mxu0 0.0
      %1427 = vmatpush.msra.mxu0 0.0
      %1428 = vmatpush.msra.mxu0 0.0
      %1429 = vmatpush.msra.mxu0 0.0
      %1430 = vmatpush.msra.mxu0 %v1375
      %1431 = vmatpush.msra.mxu0 %v1374
      %1432 = vmatmul.f32.gmra.mxu0 %v1405
      %v1433 = vpop.f32.mrf.mxu0
      %v1434 = vadd.f32 %v1387, %v1433
      %1435 = vmatmul.f32.gmra.mxu0 %v1408
      %v1436 = vpop.f32.mrf.mxu0
      %v1437 = vadd.f32 %v1392, %v1436
      %1438 = vmatmul.f32.gmra.mxu0 %v1411
      %v1439 = vpop.f32.mrf.mxu0
      %v1440 = vadd.f32 %v1397, %v1439
      %1441 = vmatmul.f32.gmra.mxu0 %v1414
      %v1442 = vpop.f32.mrf.mxu0
      %v1443 = vadd.f32 %v1402, %v1442
      %1444 = vdwg.mxu0
      %v1445 = vmax.f32 %v1434, 0.0
      %v1446 = vmax.f32 %v1437, 0.0
      %v1447 = vmax.f32 %v1440, 0.0
      %v1448 = vmax.f32 %v1443, 0.0
      %v1449 = vsel %vm1319, %v1445, 0.0
      %1450 = vadd.xlane.f32.xlu0 %v1449
      %v1451 = vpop.xlane.xlu0 %1450
      %v1452 = vsel %vm1319, %v1446, 0.0
      %1453 = vadd.xlane.f32.xlu0 %v1452
      %v1454 = vpop.xlane.xlu0 %1453
      %v1455 = vsel %vm1319, %v1447, 0.0
      %1456 = vadd.xlane.f32.xlu0 %v1455
      %v1457 = vpop.xlane.xlu0 %1456
      %v1458 = vsel %vm1319, %v1448, 0.0
      %1459 = vadd.xlane.f32.xlu0 %v1458
      %v1460 = vpop.xlane.xlu0 %1459
      %v1461 = vrcp.pop 16.0
      %v1462 = vmul.f32 16.0, %v1461
      %v1463 = vsub.f32 1.0, %v1462
      %v1464 = vmul.f32 %v1461, %v1463
      %v1465 = vadd.f32 %v1461, %v1464
      %vm1466 = vweird.f32 %v1461
      %v1467 = vsel %vm1466, %v1461, %v1465
      %v1468 = vmul.f32 %v1451, %v1467
      %v1469 = vmul.f32 %v1454, %v1467
      %v1470 = vmul.f32 %v1457, %v1467
      %v1471 = vmul.f32 %v1460, %v1467
      %vm1472 = vcmask 7168
      %1473 = vst.msk [vmem:[%s548] sm:$0xff] %vm1472, %v1468
      %1474 = vst.msk [vmem:[%s548 + $0x8] sm:$0xff] %vm1472, %v1469
      %1475 = vst.msk [vmem:[%s548 + $0x10] sm:$0xff] %vm1472, %v1470
      %1476 = vst.msk [vmem:[%s548 + $0x18] sm:$0xff] %vm1472, %v1471
      %p1477 = scmp.lt.s32.totalorder %s28, 1
      %s1478 = scalar_select %p1477, %s28, 1
      %s1479 = smul.addr %s1478, 4
      %s1480 = smul.addr %s1479, 8
      %s1481 = scalar_lea.vmem %s17, %s1480
      // Predicated region
      $region89: #{resnet18_forward.1} parent=87 // pred_check
        %p1482 = pneg %p408
      $region90: #{resnet18_forward.1} parent=87 // pred_check_branch
        %1484 = sbr.rel (%p1482) target = $region92
      $region91: #{resnet18_forward.1} parent=87 // pred_region
        _
      $region92: #{resnet18_forward.1} parent=87 // pred_fallthru
        _
    $region88: #{resnet18_forward.1} parent=5 // pred_fallthru
      _
    %p1485 = scmp.le.s32.totalorder 2, %s23
    // Predicated region
    $region93: #{resnet18_forward.1} parent=5 // pred_check
      %p1486 = pneg %p1485
    $region94: #{resnet18_forward.1} parent=5 // pred_check_branch
      %1488 = sbr.rel (%p1486) target = $region96
    $region95: #{resnet18_forward.1} parent=5 // pred_region
      %s1489 = ssub.s32 %s23, 2
      // Predicated region
      $region97: #{resnet18_forward.1} parent=95 // pred_check
        %p1490 = pneg %p414
      $region98: #{resnet18_forward.1} parent=95 // pred_check_branch
        %1492 = sbr.rel (%p1490) target = $region100
      $region99: #{resnet18_forward.1} parent=95 // pred_region
        %p1493 = scmp.lt.s32.totalorder %s29, 1
        %s1494 = scalar_select %p1493, %s29, 1
        %s1495 = smul.addr %s1494, 4
        %s1496 = smul.addr %s1495, 8
        %s1497 = scalar_lea.vmem %s17, %s1496
      $region100: #{resnet18_forward.1} parent=95 // pred_fallthru
        _
    $region96: #{resnet18_forward.1} parent=5 // pred_fallthru
      _
  $region6: #{resnet18_forward.1} parent=0 // loop_footer
    %s27 = sadd.s32 1, %s23
  $region7: #{resnet18_forward.1} parent=0 // loop_footer_branch
    %22 = sbr.rel target = $region3
  $region8: #{resnet18_forward.1} parent=0 // loop_exit
    _

</llo_original>
